<compile_context>
chip_gen: v7x
topology: tpu7x:2x2x1
jax: 0.10.0
libtpu: 0.0.40
codegen_flags: <defaults>
</compile_context>

<pallas_src>
import jax
import jax.numpy as jnp
from jax.experimental import pallas as pl
from jax.experimental.pallas import tpu as pltpu


# ---------------------------------------------------------------------------
# Generation sniff (best effort). Unknown -> conservative (v7x-sized) config.
# ---------------------------------------------------------------------------
def _vmem_generous() -> bool:
    """True on TPU generations with 128 MiB physical VMEM (v4/v5e/v6e)."""
    try:
        kind = jax.devices()[0].device_kind.lower()
    except Exception:
        return False
    return any(tag in kind for tag in ("v4", "v5", "v6"))


def _pick_tile(dim: int, target: int, granule: int) -> int:
    """Largest divisor of `dim` that is <= target and a multiple of `granule`.

    Falls back to the full extent (always a legal block shape) if none exists.
    """
    if dim <= target:
        return dim
    t = (min(target, dim) // granule) * granule
    while t >= granule:
        if dim % t == 0:
            return t
        t -= granule
    return dim


# ---------------------------------------------------------------------------
# Fused single-call path (small shapes): everything from one resident x/y copy.
# ---------------------------------------------------------------------------
def _fused_kernel(x_ref, y_ref, add_ref, mul_ref, sub_ref, div_ref, relu_ref,
                  mm_ref):
    x = x_ref[...]
    y = y_ref[...]
    add_ref[...] = x + y
    mul_ref[...] = x * y
    sub_ref[...] = x - y
    div_ref[...] = jnp.divide(x, y)
    relu_ref[...] = jnp.maximum(x, 0.0)
    mm_ref[...] = jnp.dot(x, y, preferred_element_type=jnp.float32
                          ).astype(mm_ref.dtype)


def _fused_operator(x, y):
    M, K = x.shape
    _, N = y.shape
    return pl.pallas_call(
        _fused_kernel,
        out_shape=(
            jax.ShapeDtypeStruct((M, K), x.dtype),   # add
            jax.ShapeDtypeStruct((M, K), x.dtype),   # mul
            jax.ShapeDtypeStruct((M, K), x.dtype),   # sub
            jax.ShapeDtypeStruct((M, K), x.dtype),   # div
            jax.ShapeDtypeStruct((M, K), x.dtype),   # relu
            jax.ShapeDtypeStruct((M, N), x.dtype),   # matmul (torch return value)
        ),
        compiler_params=pltpu.CompilerParams(vmem_limit_bytes=32 << 20),
    )(x, y)


# ---------------------------------------------------------------------------
# Tiled elementwise path (large shapes): five separate lane-dense outputs.
# ---------------------------------------------------------------------------
def _elementwise_kernel(x_ref, y_ref, add_ref, mul_ref, sub_ref, div_ref,
                        relu_ref):
    x = x_ref[...]
    y = y_ref[...]
    add_ref[...] = x + y
    mul_ref[...] = x * y
    sub_ref[...] = x - y
    div_ref[...] = jnp.divide(x, y)
    relu_ref[...] = jnp.maximum(x, 0.0)


def elementwise_ops(x, y):
    M, K = x.shape
    if _vmem_generous():                       # v4/v5e/v6e: 128 MiB physical VMEM
        tm_t, tk_t, vmem = 512, 1024, 64 << 20
    else:                                      # v7x (or unknown): 64 MiB physical
        tm_t, tk_t, vmem = 256, 1024, 32 << 20
    tm = _pick_tile(M, tm_t, 8)
    tk = _pick_tile(K, tk_t, 128)

    spec = pl.BlockSpec((tm, tk), lambda i, k: (i, k))
    ew_shape = jax.ShapeDtypeStruct((M, K), x.dtype)
    return pl.pallas_call(
        _elementwise_kernel,
        out_shape=(ew_shape,) * 5,
        grid_spec=pltpu.PrefetchScalarGridSpec(
            num_scalar_prefetch=0,
            grid=(M // tm, K // tk),
            in_specs=[spec, spec],
            out_specs=(spec,) * 5,
        ),
        compiler_params=pltpu.CompilerParams(
            dimension_semantics=("parallel", "parallel"),
            vmem_limit_bytes=vmem),
    )(x, y)


# ---------------------------------------------------------------------------
# Tiled MXU matmul (large shapes).
# ---------------------------------------------------------------------------
def _matmul_kernel_single_k(a_ref, b_ref, o_ref):
    # Whole K fits in one block: no accumulator, no init/finalize predication.
    o_ref[...] = jnp.dot(a_ref[...], b_ref[...],
                         preferred_element_type=jnp.float32).astype(o_ref.dtype)


def _matmul_kernel(a_ref, b_ref, o_ref, acc_ref):
    @pl.when(pl.program_id(2) == 0)
    def _():
        acc_ref[...] = jnp.zeros_like(acc_ref)

    acc_ref[...] += jnp.dot(a_ref[...], b_ref[...],
                            preferred_element_type=jnp.float32)

    @pl.when(pl.program_id(2) == pl.num_programs(2) - 1)
    def _():
        o_ref[...] = acc_ref[...].astype(o_ref.dtype)


def matmul(x, y):
    M, K = x.shape
    K2, N = y.shape
    assert K == K2
    if _vmem_generous():                       # v4/v5e/v6e
        tm_t, tn_t, tk_t, vmem = 512, 512, 2048, 64 << 20
    else:                                      # v7x (or unknown): stay <= ~32 MiB
        tm_t, tn_t, tk_t, vmem = 512, 512, 1024, 32 << 20
    tm = _pick_tile(M, tm_t, 128)
    tn = _pick_tile(N, tn_t, 128)
    tk = _pick_tile(K, tk_t, 128)

    out_shape = jax.ShapeDtypeStruct((M, N), x.dtype)

    if K // tk == 1:
        # Single reduction step: drop the accumulator entirely.
        return pl.pallas_call(
            _matmul_kernel_single_k,
            out_shape=out_shape,
            grid_spec=pltpu.PrefetchScalarGridSpec(
                num_scalar_prefetch=0,
                grid=(M // tm, N // tn),
                in_specs=[pl.BlockSpec((tm, tk), lambda i, j: (i, 0)),
                          pl.BlockSpec((tk, tn), lambda i, j: (0, j))],
                out_specs=pl.BlockSpec((tm, tn), lambda i, j: (i, j)),
            ),
            compiler_params=pltpu.CompilerParams(
                dimension_semantics=("parallel", "parallel"),
                vmem_limit_bytes=vmem),
        )(x, y)

    return pl.pallas_call(
        _matmul_kernel,
        out_shape=out_shape,
        grid_spec=pltpu.PrefetchScalarGridSpec(
            num_scalar_prefetch=0,
            grid=(M // tm, N // tn, K // tk),
            in_specs=[pl.BlockSpec((tm, tk), lambda i, j, k: (i, k)),
                      pl.BlockSpec((tk, tn), lambda i, j, k: (k, j))],
            out_specs=pl.BlockSpec((tm, tn), lambda i, j, k: (i, j)),
            scratch_shapes=[pltpu.VMEM((tm, tn), jnp.float32)],
        ),
        compiler_params=pltpu.CompilerParams(
            dimension_semantics=("parallel", "parallel", "arbitrary"),
            vmem_limit_bytes=vmem),
    )(x, y)


# ---------------------------------------------------------------------------
# Top-level wrapper: Pallas equivalent of OperatorModel.forward.
# ---------------------------------------------------------------------------
def operator_model(x: jax.Array, y: jax.Array):
    """Returns (add, mul, sub, div, relu, matmul); matmul is the torch return value."""
    # TODO(synk): torch print()s the five elementwise tensors; they are computed
    # and returned here instead of printed so stdout stays exactly "KERNEL_OK".
    M, K = x.shape
    K2, N = y.shape
    assert K == K2, "matmul shape mismatch"
    assert x.shape == y.shape, "torch elementwise ops + matmul imply square, equal shapes"

    itemsize = jnp.dtype(x.dtype).itemsize
    fused_bytes = (x.size + y.size + 5 * x.size + M * N) * itemsize
    if fused_bytes <= (12 << 20):
        # Small-shape path: everything from one VMEM-resident x/y, one launch.
        return _fused_operator(x, y)

    ew = elementwise_ops(x, y)
    mm = matmul(x, y)
    return (*ew, mm)


if __name__ == "__main__":
    # Square shapes so both the elementwise ops and the matmul are well-defined
    # (as the torch module implicitly requires). 256 keeps every lane dimension
    # a multiple of 128 while staying small; it exercises the fused fast path.
    M = K = N = 256
    key = jax.random.PRNGKey(0)
    kx, ky = jax.random.split(key)
    x = jax.random.normal(kx, (M, K), dtype=jnp.float32)
    # keep y away from zero so div matches torch semantics without inf/nan noise
    y = jax.random.uniform(ky, (K, N), dtype=jnp.float32, minval=0.5, maxval=1.5)

    add_o, mul_o, sub_o, div_o, relu_o, mm_o = operator_model(x, y)
    jax.block_until_ready((add_o, mul_o, sub_o, div_o, relu_o, mm_o))

    # correctness check against plain JAX references
    assert jnp.allclose(add_o, x + y, atol=1e-6)
    assert jnp.allclose(mul_o, x * y, atol=1e-6)
    assert jnp.allclose(sub_o, x - y, atol=1e-6)
    assert jnp.allclose(div_o, x / y, atol=1e-6)
    assert jnp.allclose(relu_o, jnp.maximum(x, 0.0), atol=1e-6)
    assert jnp.allclose(mm_o, jnp.dot(x, y, preferred_element_type=jnp.float32),
                        atol=1e-3, rtol=1e-3)

    print("KERNEL_OK")
</pallas_src>

<mosaic_0001>
module attributes {stable_mosaic.version = 11 : i64} {
  func.func @_fused_kernel(%arg0: memref<256x256xf32, #tpu.memory_space<vmem>>, %arg1: memref<256x256xf32, #tpu.memory_space<vmem>>, %arg2: memref<256x256xf32, #tpu.memory_space<vmem>>, %arg3: memref<256x256xf32, #tpu.memory_space<vmem>>, %arg4: memref<256x256xf32, #tpu.memory_space<vmem>>, %arg5: memref<256x256xf32, #tpu.memory_space<vmem>>, %arg6: memref<256x256xf32, #tpu.memory_space<vmem>>, %arg7: memref<256x256xf32, #tpu.memory_space<vmem>>) attributes {dimension_semantics = [], scalar_prefetch = 0 : i64, scratch_operands = 0 : i64, tpu.core_type = #tpu.core_type<tc>} {
    %c0 = arith.constant 0 : index
    %c0_0 = arith.constant 0 : index
    %0 = vector.load %arg0[%c0, %c0_0] : memref<256x256xf32, #tpu.memory_space<vmem>>, vector<256x256xf32>
    %c0_1 = arith.constant 0 : index
    %c0_2 = arith.constant 0 : index
    %1 = vector.load %arg1[%c0_1, %c0_2] : memref<256x256xf32, #tpu.memory_space<vmem>>, vector<256x256xf32>
    %2 = arith.addf %0, %1 : vector<256x256xf32>
    %c0_3 = arith.constant 0 : index
    %c0_4 = arith.constant 0 : index
    %3 = vector.load %arg2[%c0_3, %c0_4] : memref<256x256xf32, #tpu.memory_space<vmem>>, vector<256x256xf32>
    tpu.vector_store %arg2[%c0_3, %c0_4], %2 {strides = array<i32>} : memref<256x256xf32, #tpu.memory_space<vmem>>, vector<256x256xf32>,
    %4 = arith.mulf %0, %1 : vector<256x256xf32>
    %c0_5 = arith.constant 0 : index
    %c0_6 = arith.constant 0 : index
    %5 = vector.load %arg3[%c0_5, %c0_6] : memref<256x256xf32, #tpu.memory_space<vmem>>, vector<256x256xf32>
    tpu.vector_store %arg3[%c0_5, %c0_6], %4 {strides = array<i32>} : memref<256x256xf32, #tpu.memory_space<vmem>>, vector<256x256xf32>,
    %6 = arith.subf %0, %1 : vector<256x256xf32>
    %c0_7 = arith.constant 0 : index
    %c0_8 = arith.constant 0 : index
    %7 = vector.load %arg4[%c0_7, %c0_8] : memref<256x256xf32, #tpu.memory_space<vmem>>, vector<256x256xf32>
    tpu.vector_store %arg4[%c0_7, %c0_8], %6 {strides = array<i32>} : memref<256x256xf32, #tpu.memory_space<vmem>>, vector<256x256xf32>,
    %8 = arith.divf %0, %1 : vector<256x256xf32>
    %c0_9 = arith.constant 0 : index
    %c0_10 = arith.constant 0 : index
    %9 = vector.load %arg5[%c0_9, %c0_10] : memref<256x256xf32, #tpu.memory_space<vmem>>, vector<256x256xf32>
    tpu.vector_store %arg5[%c0_9, %c0_10], %8 {strides = array<i32>} : memref<256x256xf32, #tpu.memory_space<vmem>>, vector<256x256xf32>,
    %cst = arith.constant 0.000000e+00 : f32
    %10 = vector.broadcast %cst : f32 to vector<256x256xf32>
    %11 = arith.maximumf %0, %10 : vector<256x256xf32>
    %c0_11 = arith.constant 0 : index
    %c0_12 = arith.constant 0 : index
    %12 = vector.load %arg6[%c0_11, %c0_12] : memref<256x256xf32, #tpu.memory_space<vmem>>, vector<256x256xf32>
    tpu.vector_store %arg6[%c0_11, %c0_12], %11 {strides = array<i32>} : memref<256x256xf32, #tpu.memory_space<vmem>>, vector<256x256xf32>,
    %cst_13 = arith.constant dense<0.000000e+00> : vector<256x256xf32>
    %13 = tpu.matmul %0, %1, %cst_13 {dimension_numbers = #tpu.dot_dimension_numbers<[1], [0], [0], [1], [0, 0, 1, 1], [], []>} : vector<256x256xf32>, vector<256x256xf32>, vector<256x256xf32> -> vector<256x256xf32>
    %c0_14 = arith.constant 0 : index
    %c0_15 = arith.constant 0 : index
    %14 = vector.load %arg7[%c0_14, %c0_15] : memref<256x256xf32, #tpu.memory_space<vmem>>, vector<256x256xf32>
    tpu.vector_store %arg7[%c0_14, %c0_15], %13 {strides = array<i32>} : memref<256x256xf32, #tpu.memory_space<vmem>>, vector<256x256xf32>,
    return
  }
}

</mosaic_0001>

<llo_original>
// kernel: tpu_custom_call.1
$region0: #{tpu_custom_call.1}
  #allocation0 [shape = 'u32[]', space=smem, size = 0x4, offset = 0x4, fixed_abs, tag = 'smem constant byte address 0x4 - core index']
  #allocation1 [shape = 'u32[144,128]{1,0:T(1,128)}', space=vmem, size = 0x12000, scoped, tag = 'internal scratch']
  %s0 = inlined_call_operand.hbm [shape: f32[256,256], index: 0, kind: input, shape index: {}]
  %s1 = inlined_call_operand.hbm [shape: f32[256,256], index: 1, kind: input, shape index: {}]
  %s2 = inlined_call_operand.hbm [shape: f32[256,256], index: 2, kind: output, shape index: {0}]
  %s3 = inlined_call_operand.hbm [shape: f32[256,256], index: 3, kind: output, shape index: {1}]
  %s4 = inlined_call_operand.hbm [shape: f32[256,256], index: 4, kind: output, shape index: {2}]
  %s5 = inlined_call_operand.hbm [shape: f32[256,256], index: 5, kind: output, shape index: {3}]
  %s6 = inlined_call_operand.hbm [shape: f32[256,256], index: 6, kind: output, shape index: {4}]
  %s7 = inlined_call_operand.hbm [shape: f32[256,256], index: 7, kind: output, shape index: {5}]
  %8 = xla_tuple %s2, %s3, %s4, %s5, %s6, %s7
  %s9 = sld [smem:[#allocation0]]
  $region66: #{tpu_custom_call.1} parent=0
    _
  %s11 = ssub.s32 1, %s9
  %s12 = scalar_select 0, %s11, %s9
  $region1: #{tpu_custom_call.1} parent=0
    #allocation2 [shape = 'u8[262144]{0}', space=vmem, size = 0x40000, scoped, tag = 'input window, operand 0, single buffered']
    #allocation3 [shape = 's32[1]{0}', space=sflag, size = 0x4, scoped, tag = 'scoped memory for tpu_custom_call.1']
    #allocation4 [shape = 's32[1]{0}', space=sflag, size = 0x4, scoped, tag = 'scoped memory for tpu_custom_call.1']
    #allocation5 [shape = 'u8[262144]{0}', space=vmem, size = 0x40000, scoped, tag = 'input window, operand 1, single buffered']
    #allocation6 [shape = 's32[1]{0}', space=sflag, size = 0x4, scoped, tag = 'scoped memory for tpu_custom_call.1']
    #allocation7 [shape = 'u8[262144]{0}', space=vmem, size = 0x40000, scoped, tag = 'output window, operand 0, single buffered']
    #allocation8 [shape = 'u8[262144]{0}', space=vmem, size = 0x40000, scoped, tag = 'output window, operand 1, single buffered']
    #allocation9 [shape = 's32[1]{0}', space=sflag, size = 0x4, scoped, tag = 'scoped memory for tpu_custom_call.1']
    #allocation10 [shape = 'u8[262144]{0}', space=vmem, size = 0x40000, scoped, tag = 'output window, operand 2, single buffered']
    #allocation11 [shape = 'u8[262144]{0}', space=vmem, size = 0x40000, scoped, tag = 'output window, operand 3, single buffered']
    #allocation12 [shape = 's32[1]{0}', space=sflag, size = 0x4, scoped, tag = 'scoped memory for tpu_custom_call.1']
    #allocation13 [shape = 'u8[262144]{0}', space=vmem, size = 0x40000, scoped, tag = 'output window, operand 4, single buffered']
    #allocation14 [shape = 'u8[262144]{0}', space=vmem, size = 0x40000, scoped, tag = 'output window, operand 5, single buffered']
    #allocation15 [shape = 's32[1]{0}', space=sflag, size = 0x4, scoped, tag = 'scoped memory for tpu_custom_call.1']
    %13 = vsyncpa [#allocation3], 0
    %14 = vsyncpa [#allocation6], 0
    %15 = vsyncpa [#allocation4], 0
    %16 = vsyncpa [#allocation9], 0
    %17 = vsyncpa [#allocation12], 0
    %18 = vsyncpa [#allocation15], 0
    // Predicated region
    $region2: #{tpu_custom_call.1} parent=1 // pred_check
      _
    $region3: #{tpu_custom_call.1} parent=1 // pred_check_branch
      %20 = sbr.rel (0) target = $region5
    $region4: #{tpu_custom_call.1} parent=1 // pred_region
      %s22 = ssub.s32 8192, 8192
      %23 = vsyncadd [#allocation3], %s22
      %s24 = sshll.u32 [#allocation2], 4
      %s25 = int_to_ptr.vmem [resolvable:$true] %s24
      %30 = dma.hbm_to_vmem [thread:$0]  %s0, 8192, %s25, [#allocation3], 256, 256, 16
    $region5: #{tpu_custom_call.1} parent=1 // pred_fallthru
      _
    // Predicated region
    $region6: #{tpu_custom_call.1} parent=1 // pred_check
      _
    $region7: #{tpu_custom_call.1} parent=1 // pred_check_branch
      %32 = sbr.rel (0) target = $region9
    $region8: #{tpu_custom_call.1} parent=1 // pred_region
      %s34 = ssub.s32 8192, 8192
      %35 = vsyncadd [#allocation6], %s34
      %s36 = sshll.u32 [#allocation5], 4
      %s37 = int_to_ptr.vmem [resolvable:$true] %s36
      %42 = dma.hbm_to_vmem [thread:$0]  %s1, 8192, %s37, [#allocation6], 256, 256, 16
    $region9: #{tpu_custom_call.1} parent=1 // pred_fallthru
      _
    // Predicated region
    $region10: #{tpu_custom_call.1} parent=1 // pred_check
      _
    $region11: #{tpu_custom_call.1} parent=1 // pred_check_branch
      %44 = sbr.rel (0) target = $region13
    $region12: #{tpu_custom_call.1} parent=1 // pred_region
      %45 = dma.done [#allocation3], 8192
    $region13: #{tpu_custom_call.1} parent=1 // pred_fallthru
      _
    // Predicated region
    $region14: #{tpu_custom_call.1} parent=1 // pred_check
      _
    $region15: #{tpu_custom_call.1} parent=1 // pred_check_branch
      %47 = sbr.rel (0) target = $region17
    $region16: #{tpu_custom_call.1} parent=1 // pred_region
      %48 = dma.done [#allocation6], 8192
    $region17: #{tpu_custom_call.1} parent=1 // pred_fallthru
      _
    %v49 = vld [vmem:[#allocation2] sm:$0xff]
    %v50 = vld [vmem:[#allocation2 + $0x8] sm:$0xff]
    %v51 = vld [vmem:[#allocation2 + $0x10] sm:$0xff]
    %v52 = vld [vmem:[#allocation2 + $0x18] sm:$0xff]
    %v53 = vld [vmem:[#allocation2 + $0x20] sm:$0xff]
    %v54 = vld [vmem:[#allocation2 + $0x28] sm:$0xff]
    %v55 = vld [vmem:[#allocation2 + $0x30] sm:$0xff]
    %v56 = vld [vmem:[#allocation2 + $0x38] sm:$0xff]
    %v57 = vld [vmem:[#allocation2 + $0x40] sm:$0xff]
    %v58 = vld [vmem:[#allocation2 + $0x48] sm:$0xff]
    %v59 = vld [vmem:[#allocation2 + $0x50] sm:$0xff]
    %v60 = vld [vmem:[#allocation2 + $0x58] sm:$0xff]
    %v61 = vld [vmem:[#allocation2 + $0x60] sm:$0xff]
    %v62 = vld [vmem:[#allocation2 + $0x68] sm:$0xff]
    %v63 = vld [vmem:[#allocation2 + $0x70] sm:$0xff]
    %v64 = vld [vmem:[#allocation2 + $0x78] sm:$0xff]
    %v65 = vld [vmem:[#allocation2 + $0x80] sm:$0xff]
    %v66 = vld [vmem:[#allocation2 + $0x88] sm:$0xff]
    %v67 = vld [vmem:[#allocation2 + $0x90] sm:$0xff]
    %v68 = vld [vmem:[#allocation2 + $0x98] sm:$0xff]
    %v69 = vld [vmem:[#allocation2 + $0xa0] sm:$0xff]
    %v70 = vld [vmem:[#allocation2 + $0xa8] sm:$0xff]
    %v71 = vld [vmem:[#allocation2 + $0xb0] sm:$0xff]
    %v72 = vld [vmem:[#allocation2 + $0xb8] sm:$0xff]
    %v73 = vld [vmem:[#allocation2 + $0xc0] sm:$0xff]
    %v74 = vld [vmem:[#allocation2 + $0xc8] sm:$0xff]
    %v75 = vld [vmem:[#allocation2 + $0xd0] sm:$0xff]
    %v76 = vld [vmem:[#allocation2 + $0xd8] sm:$0xff]
    %v77 = vld [vmem:[#allocation2 + $0xe0] sm:$0xff]
    %v78 = vld [vmem:[#allocation2 + $0xe8] sm:$0xff]
    %v79 = vld [vmem:[#allocation2 + $0xf0] sm:$0xff]
    %v80 = vld [vmem:[#allocation2 + $0xf8] sm:$0xff]
    %v81 = vld [vmem:[#allocation2 + $0x100] sm:$0xff]
    %v82 = vld [vmem:[#allocation2 + $0x108] sm:$0xff]
    %v83 = vld [vmem:[#allocation2 + $0x110] sm:$0xff]
    %v84 = vld [vmem:[#allocation2 + $0x118] sm:$0xff]
    %v85 = vld [vmem:[#allocation2 + $0x120] sm:$0xff]
    %v86 = vld [vmem:[#allocation2 + $0x128] sm:$0xff]
    %v87 = vld [vmem:[#allocation2 + $0x130] sm:$0xff]
    %v88 = vld [vmem:[#allocation2 + $0x138] sm:$0xff]
    %v89 = vld [vmem:[#allocation2 + $0x140] sm:$0xff]
    %v90 = vld [vmem:[#allocation2 + $0x148] sm:$0xff]
    %v91 = vld [vmem:[#allocation2 + $0x150] sm:$0xff]
    %v92 = vld [vmem:[#allocation2 + $0x158] sm:$0xff]
    %v93 = vld [vmem:[#allocation2 + $0x160] sm:$0xff]
    %v94 = vld [vmem:[#allocation2 + $0x168] sm:$0xff]
    %v95 = vld [vmem:[#allocation2 + $0x170] sm:$0xff]
    %v96 = vld [vmem:[#allocation2 + $0x178] sm:$0xff]
    %v97 = vld [vmem:[#allocation2 + $0x180] sm:$0xff]
    %v98 = vld [vmem:[#allocation2 + $0x188] sm:$0xff]
    %v99 = vld [vmem:[#allocation2 + $0x190] sm:$0xff]
    %v100 = vld [vmem:[#allocation2 + $0x198] sm:$0xff]
    %v101 = vld [vmem:[#allocation2 + $0x1a0] sm:$0xff]
    %v102 = vld [vmem:[#allocation2 + $0x1a8] sm:$0xff]
    %v103 = vld [vmem:[#allocation2 + $0x1b0] sm:$0xff]
    %v104 = vld [vmem:[#allocation2 + $0x1b8] sm:$0xff]
    %v105 = vld [vmem:[#allocation2 + $0x1c0] sm:$0xff]
    %v106 = vld [vmem:[#allocation2 + $0x1c8] sm:$0xff]
    %v107 = vld [vmem:[#allocation2 + $0x1d0] sm:$0xff]
    %v108 = vld [vmem:[#allocation2 + $0x1d8] sm:$0xff]
    %v109 = vld [vmem:[#allocation2 + $0x1e0] sm:$0xff]
    %v110 = vld [vmem:[#allocation2 + $0x1e8] sm:$0xff]
    %v111 = vld [vmem:[#allocation2 + $0x1f0] sm:$0xff]
    %v112 = vld [vmem:[#allocation2 + $0x1f8] sm:$0xff]
    %v113 = vld [vmem:[#allocation5] sm:$0xff]
    %v114 = vld [vmem:[#allocation5 + $0x8] sm:$0xff]
    %v115 = vld [vmem:[#allocation5 + $0x10] sm:$0xff]
    %v116 = vld [vmem:[#allocation5 + $0x18] sm:$0xff]
    %v117 = vld [vmem:[#allocation5 + $0x20] sm:$0xff]
    %v118 = vld [vmem:[#allocation5 + $0x28] sm:$0xff]
    %v119 = vld [vmem:[#allocation5 + $0x30] sm:$0xff]
    %v120 = vld [vmem:[#allocation5 + $0x38] sm:$0xff]
    %v121 = vld [vmem:[#allocation5 + $0x40] sm:$0xff]
    %v122 = vld [vmem:[#allocation5 + $0x48] sm:$0xff]
    %v123 = vld [vmem:[#allocation5 + $0x50] sm:$0xff]
    %v124 = vld [vmem:[#allocation5 + $0x58] sm:$0xff]
    %v125 = vld [vmem:[#allocation5 + $0x60] sm:$0xff]
    %v126 = vld [vmem:[#allocation5 + $0x68] sm:$0xff]
    %v127 = vld [vmem:[#allocation5 + $0x70] sm:$0xff]
    %v128 = vld [vmem:[#allocation5 + $0x78] sm:$0xff]
    %v129 = vld [vmem:[#allocation5 + $0x80] sm:$0xff]
    %v130 = vld [vmem:[#allocation5 + $0x88] sm:$0xff]
    %v131 = vld [vmem:[#allocation5 + $0x90] sm:$0xff]
    %v132 = vld [vmem:[#allocation5 + $0x98] sm:$0xff]
    %v133 = vld [vmem:[#allocation5 + $0xa0] sm:$0xff]
    %v134 = vld [vmem:[#allocation5 + $0xa8] sm:$0xff]
    %v135 = vld [vmem:[#allocation5 + $0xb0] sm:$0xff]
    %v136 = vld [vmem:[#allocation5 + $0xb8] sm:$0xff]
    %v137 = vld [vmem:[#allocation5 + $0xc0] sm:$0xff]
    %v138 = vld [vmem:[#allocation5 + $0xc8] sm:$0xff]
    %v139 = vld [vmem:[#allocation5 + $0xd0] sm:$0xff]
    %v140 = vld [vmem:[#allocation5 + $0xd8] sm:$0xff]
    %v141 = vld [vmem:[#allocation5 + $0xe0] sm:$0xff]
    %v142 = vld [vmem:[#allocation5 + $0xe8] sm:$0xff]
    %v143 = vld [vmem:[#allocation5 + $0xf0] sm:$0xff]
    %v144 = vld [vmem:[#allocation5 + $0xf8] sm:$0xff]
    %v145 = vld [vmem:[#allocation5 + $0x100] sm:$0xff]
    %v146 = vld [vmem:[#allocation5 + $0x108] sm:$0xff]
    %v147 = vld [vmem:[#allocation5 + $0x110] sm:$0xff]
    %v148 = vld [vmem:[#allocation5 + $0x118] sm:$0xff]
    %v149 = vld [vmem:[#allocation5 + $0x120] sm:$0xff]
    %v150 = vld [vmem:[#allocation5 + $0x128] sm:$0xff]
    %v151 = vld [vmem:[#allocation5 + $0x130] sm:$0xff]
    %v152 = vld [vmem:[#allocation5 + $0x138] sm:$0xff]
    %v153 = vld [vmem:[#allocation5 + $0x140] sm:$0xff]
    %v154 = vld [vmem:[#allocation5 + $0x148] sm:$0xff]
    %v155 = vld [vmem:[#allocation5 + $0x150] sm:$0xff]
    %v156 = vld [vmem:[#allocation5 + $0x158] sm:$0xff]
    %v157 = vld [vmem:[#allocation5 + $0x160] sm:$0xff]
    %v158 = vld [vmem:[#allocation5 + $0x168] sm:$0xff]
    %v159 = vld [vmem:[#allocation5 + $0x170] sm:$0xff]
    %v160 = vld [vmem:[#allocation5 + $0x178] sm:$0xff]
    %v161 = vld [vmem:[#allocation5 + $0x180] sm:$0xff]
    %v162 = vld [vmem:[#allocation5 + $0x188] sm:$0xff]
    %v163 = vld [vmem:[#allocation5 + $0x190] sm:$0xff]
    %v164 = vld [vmem:[#allocation5 + $0x198] sm:$0xff]
    %v165 = vld [vmem:[#allocation5 + $0x1a0] sm:$0xff]
    %v166 = vld [vmem:[#allocation5 + $0x1a8] sm:$0xff]
    %v167 = vld [vmem:[#allocation5 + $0x1b0] sm:$0xff]
    %v168 = vld [vmem:[#allocation5 + $0x1b8] sm:$0xff]
    %v169 = vld [vmem:[#allocation5 + $0x1c0] sm:$0xff]
    %v170 = vld [vmem:[#allocation5 + $0x1c8] sm:$0xff]
    %v171 = vld [vmem:[#allocation5 + $0x1d0] sm:$0xff]
    %v172 = vld [vmem:[#allocation5 + $0x1d8] sm:$0xff]
    %v173 = vld [vmem:[#allocation5 + $0x1e0] sm:$0xff]
    %v174 = vld [vmem:[#allocation5 + $0x1e8] sm:$0xff]
    %v175 = vld [vmem:[#allocation5 + $0x1f0] sm:$0xff]
    %v176 = vld [vmem:[#allocation5 + $0x1f8] sm:$0xff]
    %v177 = vadd.f32 %v49, %v113
    %v178 = vadd.f32 %v50, %v114
    %v179 = vadd.f32 %v51, %v115
    %v180 = vadd.f32 %v52, %v116
    %v181 = vadd.f32 %v53, %v117
    %v182 = vadd.f32 %v54, %v118
    %v183 = vadd.f32 %v55, %v119
    %v184 = vadd.f32 %v56, %v120
    %v185 = vadd.f32 %v57, %v121
    %v186 = vadd.f32 %v58, %v122
    %v187 = vadd.f32 %v59, %v123
    %v188 = vadd.f32 %v60, %v124
    %v189 = vadd.f32 %v61, %v125
    %v190 = vadd.f32 %v62, %v126
    %v191 = vadd.f32 %v63, %v127
    %v192 = vadd.f32 %v64, %v128
    %v193 = vadd.f32 %v65, %v129
    %v194 = vadd.f32 %v66, %v130
    %v195 = vadd.f32 %v67, %v131
    %v196 = vadd.f32 %v68, %v132
    %v197 = vadd.f32 %v69, %v133
    %v198 = vadd.f32 %v70, %v134
    %v199 = vadd.f32 %v71, %v135
    %v200 = vadd.f32 %v72, %v136
    %v201 = vadd.f32 %v73, %v137
    %v202 = vadd.f32 %v74, %v138
    %v203 = vadd.f32 %v75, %v139
    %v204 = vadd.f32 %v76, %v140
    %v205 = vadd.f32 %v77, %v141
    %v206 = vadd.f32 %v78, %v142
    %v207 = vadd.f32 %v79, %v143
    %v208 = vadd.f32 %v80, %v144
    %v209 = vadd.f32 %v81, %v145
    %v210 = vadd.f32 %v82, %v146
    %v211 = vadd.f32 %v83, %v147
    %v212 = vadd.f32 %v84, %v148
    %v213 = vadd.f32 %v85, %v149
    %v214 = vadd.f32 %v86, %v150
    %v215 = vadd.f32 %v87, %v151
    %v216 = vadd.f32 %v88, %v152
    %v217 = vadd.f32 %v89, %v153
    %v218 = vadd.f32 %v90, %v154
    %v219 = vadd.f32 %v91, %v155
    %v220 = vadd.f32 %v92, %v156
    %v221 = vadd.f32 %v93, %v157
    %v222 = vadd.f32 %v94, %v158
    %v223 = vadd.f32 %v95, %v159
    %v224 = vadd.f32 %v96, %v160
    %v225 = vadd.f32 %v97, %v161
    %v226 = vadd.f32 %v98, %v162
    %v227 = vadd.f32 %v99, %v163
    %v228 = vadd.f32 %v100, %v164
    %v229 = vadd.f32 %v101, %v165
    %v230 = vadd.f32 %v102, %v166
    %v231 = vadd.f32 %v103, %v167
    %v232 = vadd.f32 %v104, %v168
    %v233 = vadd.f32 %v105, %v169
    %v234 = vadd.f32 %v106, %v170
    %v235 = vadd.f32 %v107, %v171
    %v236 = vadd.f32 %v108, %v172
    %v237 = vadd.f32 %v109, %v173
    %v238 = vadd.f32 %v110, %v174
    %v239 = vadd.f32 %v111, %v175
    %v240 = vadd.f32 %v112, %v176
    %241 = vst [vmem:[#allocation7] sm:$0xff] %v177
    %242 = vst [vmem:[#allocation7 + $0x8] sm:$0xff] %v178
    %243 = vst [vmem:[#allocation7 + $0x10] sm:$0xff] %v179
    %244 = vst [vmem:[#allocation7 + $0x18] sm:$0xff] %v180
    %245 = vst [vmem:[#allocation7 + $0x20] sm:$0xff] %v181
    %246 = vst [vmem:[#allocation7 + $0x28] sm:$0xff] %v182
    %247 = vst [vmem:[#allocation7 + $0x30] sm:$0xff] %v183
    %248 = vst [vmem:[#allocation7 + $0x38] sm:$0xff] %v184
    %249 = vst [vmem:[#allocation7 + $0x40] sm:$0xff] %v185
    %250 = vst [vmem:[#allocation7 + $0x48] sm:$0xff] %v186
    %251 = vst [vmem:[#allocation7 + $0x50] sm:$0xff] %v187
    %252 = vst [vmem:[#allocation7 + $0x58] sm:$0xff] %v188
    %253 = vst [vmem:[#allocation7 + $0x60] sm:$0xff] %v189
    %254 = vst [vmem:[#allocation7 + $0x68] sm:$0xff] %v190
    %255 = vst [vmem:[#allocation7 + $0x70] sm:$0xff] %v191
    %256 = vst [vmem:[#allocation7 + $0x78] sm:$0xff] %v192
    %257 = vst [vmem:[#allocation7 + $0x80] sm:$0xff] %v193
    %258 = vst [vmem:[#allocation7 + $0x88] sm:$0xff] %v194
    %259 = vst [vmem:[#allocation7 + $0x90] sm:$0xff] %v195
    %260 = vst [vmem:[#allocation7 + $0x98] sm:$0xff] %v196
    %261 = vst [vmem:[#allocation7 + $0xa0] sm:$0xff] %v197
    %262 = vst [vmem:[#allocation7 + $0xa8] sm:$0xff] %v198
    %263 = vst [vmem:[#allocation7 + $0xb0] sm:$0xff] %v199
    %264 = vst [vmem:[#allocation7 + $0xb8] sm:$0xff] %v200
    %265 = vst [vmem:[#allocation7 + $0xc0] sm:$0xff] %v201
    %266 = vst [vmem:[#allocation7 + $0xc8] sm:$0xff] %v202
    %267 = vst [vmem:[#allocation7 + $0xd0] sm:$0xff] %v203
    %268 = vst [vmem:[#allocation7 + $0xd8] sm:$0xff] %v204
    %269 = vst [vmem:[#allocation7 + $0xe0] sm:$0xff] %v205
    %270 = vst [vmem:[#allocation7 + $0xe8] sm:$0xff] %v206
    %271 = vst [vmem:[#allocation7 + $0xf0] sm:$0xff] %v207
    %272 = vst [vmem:[#allocation7 + $0xf8] sm:$0xff] %v208
    %273 = vst [vmem:[#allocation7 + $0x100] sm:$0xff] %v209
    %274 = vst [vmem:[#allocation7 + $0x108] sm:$0xff] %v210
    %275 = vst [vmem:[#allocation7 + $0x110] sm:$0xff] %v211
    %276 = vst [vmem:[#allocation7 + $0x118] sm:$0xff] %v212
    %277 = vst [vmem:[#allocation7 + $0x120] sm:$0xff] %v213
    %278 = vst [vmem:[#allocation7 + $0x128] sm:$0xff] %v214
    %279 = vst [vmem:[#allocation7 + $0x130] sm:$0xff] %v215
    %280 = vst [vmem:[#allocation7 + $0x138] sm:$0xff] %v216
    %281 = vst [vmem:[#allocation7 + $0x140] sm:$0xff] %v217
    %282 = vst [vmem:[#allocation7 + $0x148] sm:$0xff] %v218
    %283 = vst [vmem:[#allocation7 + $0x150] sm:$0xff] %v219
    %284 = vst [vmem:[#allocation7 + $0x158] sm:$0xff] %v220
    %285 = vst [vmem:[#allocation7 + $0x160] sm:$0xff] %v221
    %286 = vst [vmem:[#allocation7 + $0x168] sm:$0xff] %v222
    %287 = vst [vmem:[#allocation7 + $0x170] sm:$0xff] %v223
    %288 = vst [vmem:[#allocation7 + $0x178] sm:$0xff] %v224
    %289 = vst [vmem:[#allocation7 + $0x180] sm:$0xff] %v225
    %290 = vst [vmem:[#allocation7 + $0x188] sm:$0xff] %v226
    %291 = vst [vmem:[#allocation7 + $0x190] sm:$0xff] %v227
    %292 = vst [vmem:[#allocation7 + $0x198] sm:$0xff] %v228
    %293 = vst [vmem:[#allocation7 + $0x1a0] sm:$0xff] %v229
    %294 = vst [vmem:[#allocation7 + $0x1a8] sm:$0xff] %v230
    %295 = vst [vmem:[#allocation7 + $0x1b0] sm:$0xff] %v231
    %296 = vst [vmem:[#allocation7 + $0x1b8] sm:$0xff] %v232
    %297 = vst [vmem:[#allocation7 + $0x1c0] sm:$0xff] %v233
    %298 = vst [vmem:[#allocation7 + $0x1c8] sm:$0xff] %v234
    %299 = vst [vmem:[#allocation7 + $0x1d0] sm:$0xff] %v235
    %300 = vst [vmem:[#allocation7 + $0x1d8] sm:$0xff] %v236
    %301 = vst [vmem:[#allocation7 + $0x1e0] sm:$0xff] %v237
    %302 = vst [vmem:[#allocation7 + $0x1e8] sm:$0xff] %v238
    %303 = vst [vmem:[#allocation7 + $0x1f0] sm:$0xff] %v239
    %304 = vst [vmem:[#allocation7 + $0x1f8] sm:$0xff] %v240
    %v305 = vmul.f32 %v49, %v113
    %v306 = vmul.f32 %v50, %v114
    %v307 = vmul.f32 %v51, %v115
    %v308 = vmul.f32 %v52, %v116
    %v309 = vmul.f32 %v53, %v117
    %v310 = vmul.f32 %v54, %v118
    %v311 = vmul.f32 %v55, %v119
    %v312 = vmul.f32 %v56, %v120
    %v313 = vmul.f32 %v57, %v121
    %v314 = vmul.f32 %v58, %v122
    %v315 = vmul.f32 %v59, %v123
    %v316 = vmul.f32 %v60, %v124
    %v317 = vmul.f32 %v61, %v125
    %v318 = vmul.f32 %v62, %v126
    %v319 = vmul.f32 %v63, %v127
    %v320 = vmul.f32 %v64, %v128
    %v321 = vmul.f32 %v65, %v129
    %v322 = vmul.f32 %v66, %v130
    %v323 = vmul.f32 %v67, %v131
    %v324 = vmul.f32 %v68, %v132
    %v325 = vmul.f32 %v69, %v133
    %v326 = vmul.f32 %v70, %v134
    %v327 = vmul.f32 %v71, %v135
    %v328 = vmul.f32 %v72, %v136
    %v329 = vmul.f32 %v73, %v137
    %v330 = vmul.f32 %v74, %v138
    %v331 = vmul.f32 %v75, %v139
    %v332 = vmul.f32 %v76, %v140
    %v333 = vmul.f32 %v77, %v141
    %v334 = vmul.f32 %v78, %v142
    %v335 = vmul.f32 %v79, %v143
    %v336 = vmul.f32 %v80, %v144
    %v337 = vmul.f32 %v81, %v145
    %v338 = vmul.f32 %v82, %v146
    %v339 = vmul.f32 %v83, %v147
    %v340 = vmul.f32 %v84, %v148
    %v341 = vmul.f32 %v85, %v149
    %v342 = vmul.f32 %v86, %v150
    %v343 = vmul.f32 %v87, %v151
    %v344 = vmul.f32 %v88, %v152
    %v345 = vmul.f32 %v89, %v153
    %v346 = vmul.f32 %v90, %v154
    %v347 = vmul.f32 %v91, %v155
    %v348 = vmul.f32 %v92, %v156
    %v349 = vmul.f32 %v93, %v157
    %v350 = vmul.f32 %v94, %v158
    %v351 = vmul.f32 %v95, %v159
    %v352 = vmul.f32 %v96, %v160
    %v353 = vmul.f32 %v97, %v161
    %v354 = vmul.f32 %v98, %v162
    %v355 = vmul.f32 %v99, %v163
    %v356 = vmul.f32 %v100, %v164
    %v357 = vmul.f32 %v101, %v165
    %v358 = vmul.f32 %v102, %v166
    %v359 = vmul.f32 %v103, %v167
    %v360 = vmul.f32 %v104, %v168
    %v361 = vmul.f32 %v105, %v169
    %v362 = vmul.f32 %v106, %v170
    %v363 = vmul.f32 %v107, %v171
    %v364 = vmul.f32 %v108, %v172
    %v365 = vmul.f32 %v109, %v173
    %v366 = vmul.f32 %v110, %v174
    %v367 = vmul.f32 %v111, %v175
    %v368 = vmul.f32 %v112, %v176
    %369 = vst [vmem:[#allocation8] sm:$0xff] %v305
    %370 = vst [vmem:[#allocation8 + $0x8] sm:$0xff] %v306
    %371 = vst [vmem:[#allocation8 + $0x10] sm:$0xff] %v307
    %372 = vst [vmem:[#allocation8 + $0x18] sm:$0xff] %v308
    %373 = vst [vmem:[#allocation8 + $0x20] sm:$0xff] %v309
    %374 = vst [vmem:[#allocation8 + $0x28] sm:$0xff] %v310
    %375 = vst [vmem:[#allocation8 + $0x30] sm:$0xff] %v311
    %376 = vst [vmem:[#allocation8 + $0x38] sm:$0xff] %v312
    %377 = vst [vmem:[#allocation8 + $0x40] sm:$0xff] %v313
    %378 = vst [vmem:[#allocation8 + $0x48] sm:$0xff] %v314
    %379 = vst [vmem:[#allocation8 + $0x50] sm:$0xff] %v315
    %380 = vst [vmem:[#allocation8 + $0x58] sm:$0xff] %v316
    %381 = vst [vmem:[#allocation8 + $0x60] sm:$0xff] %v317
    %382 = vst [vmem:[#allocation8 + $0x68] sm:$0xff] %v318
    %383 = vst [vmem:[#allocation8 + $0x70] sm:$0xff] %v319
    %384 = vst [vmem:[#allocation8 + $0x78] sm:$0xff] %v320
    %385 = vst [vmem:[#allocation8 + $0x80] sm:$0xff] %v321
    %386 = vst [vmem:[#allocation8 + $0x88] sm:$0xff] %v322
    %387 = vst [vmem:[#allocation8 + $0x90] sm:$0xff] %v323
    %388 = vst [vmem:[#allocation8 + $0x98] sm:$0xff] %v324
    %389 = vst [vmem:[#allocation8 + $0xa0] sm:$0xff] %v325
    %390 = vst [vmem:[#allocation8 + $0xa8] sm:$0xff] %v326
    %391 = vst [vmem:[#allocation8 + $0xb0] sm:$0xff] %v327
    %392 = vst [vmem:[#allocation8 + $0xb8] sm:$0xff] %v328
    %393 = vst [vmem:[#allocation8 + $0xc0] sm:$0xff] %v329
    %394 = vst [vmem:[#allocation8 + $0xc8] sm:$0xff] %v330
    %395 = vst [vmem:[#allocation8 + $0xd0] sm:$0xff] %v331
    %396 = vst [vmem:[#allocation8 + $0xd8] sm:$0xff] %v332
    %397 = vst [vmem:[#allocation8 + $0xe0] sm:$0xff] %v333
    %398 = vst [vmem:[#allocation8 + $0xe8] sm:$0xff] %v334
    %399 = vst [vmem:[#allocation8 + $0xf0] sm:$0xff] %v335
    %400 = vst [vmem:[#allocation8 + $0xf8] sm:$0xff] %v336
    %401 = vst [vmem:[#allocation8 + $0x100] sm:$0xff] %v337
    %402 = vst [vmem:[#allocation8 + $0x108] sm:$0xff] %v338
    %403 = vst [vmem:[#allocation8 + $0x110] sm:$0xff] %v339
    %404 = vst [vmem:[#allocation8 + $0x118] sm:$0xff] %v340
    %405 = vst [vmem:[#allocation8 + $0x120] sm:$0xff] %v341
    %406 = vst [vmem:[#allocation8 + $0x128] sm:$0xff] %v342
    %407 = vst [vmem:[#allocation8 + $0x130] sm:$0xff] %v343
    %408 = vst [vmem:[#allocation8 + $0x138] sm:$0xff] %v344
    %409 = vst [vmem:[#allocation8 + $0x140] sm:$0xff] %v345
    %410 = vst [vmem:[#allocation8 + $0x148] sm:$0xff] %v346
    %411 = vst [vmem:[#allocation8 + $0x150] sm:$0xff] %v347
    %412 = vst [vmem:[#allocation8 + $0x158] sm:$0xff] %v348
    %413 = vst [vmem:[#allocation8 + $0x160] sm:$0xff] %v349
    %414 = vst [vmem:[#allocation8 + $0x168] sm:$0xff] %v350
    %415 = vst [vmem:[#allocation8 + $0x170] sm:$0xff] %v351
    %416 = vst [vmem:[#allocation8 + $0x178] sm:$0xff] %v352
    %417 = vst [vmem:[#allocation8 + $0x180] sm:$0xff] %v353
    %418 = vst [vmem:[#allocation8 + $0x188] sm:$0xff] %v354
    %419 = vst [vmem:[#allocation8 + $0x190] sm:$0xff] %v355
    %420 = vst [vmem:[#allocation8 + $0x198] sm:$0xff] %v356
    %421 = vst [vmem:[#allocation8 + $0x1a0] sm:$0xff] %v357
    %422 = vst [vmem:[#allocation8 + $0x1a8] sm:$0xff] %v358
    %423 = vst [vmem:[#allocation8 + $0x1b0] sm:$0xff] %v359
    %424 = vst [vmem:[#allocation8 + $0x1b8] sm:$0xff] %v360
    %425 = vst [vmem:[#allocation8 + $0x1c0] sm:$0xff] %v361
    %426 = vst [vmem:[#allocation8 + $0x1c8] sm:$0xff] %v362
    %427 = vst [vmem:[#allocation8 + $0x1d0] sm:$0xff] %v363
    %428 = vst [vmem:[#allocation8 + $0x1d8] sm:$0xff] %v364
    %429 = vst [vmem:[#allocation8 + $0x1e0] sm:$0xff] %v365
    %430 = vst [vmem:[#allocation8 + $0x1e8] sm:$0xff] %v366
    %431 = vst [vmem:[#allocation8 + $0x1f0] sm:$0xff] %v367
    %432 = vst [vmem:[#allocation8 + $0x1f8] sm:$0xff] %v368
    %v433 = vsub.f32 %v49, %v113
    %v434 = vsub.f32 %v50, %v114
    %v435 = vsub.f32 %v51, %v115
    %v436 = vsub.f32 %v52, %v116
    %v437 = vsub.f32 %v53, %v117
    %v438 = vsub.f32 %v54, %v118
    %v439 = vsub.f32 %v55, %v119
    %v440 = vsub.f32 %v56, %v120
    %v441 = vsub.f32 %v57, %v121
    %v442 = vsub.f32 %v58, %v122
    %v443 = vsub.f32 %v59, %v123
    %v444 = vsub.f32 %v60, %v124
    %v445 = vsub.f32 %v61, %v125
    %v446 = vsub.f32 %v62, %v126
    %v447 = vsub.f32 %v63, %v127
    %v448 = vsub.f32 %v64, %v128
    %v449 = vsub.f32 %v65, %v129
    %v450 = vsub.f32 %v66, %v130
    %v451 = vsub.f32 %v67, %v131
    %v452 = vsub.f32 %v68, %v132
    %v453 = vsub.f32 %v69, %v133
    %v454 = vsub.f32 %v70, %v134
    %v455 = vsub.f32 %v71, %v135
    %v456 = vsub.f32 %v72, %v136
    %v457 = vsub.f32 %v73, %v137
    %v458 = vsub.f32 %v74, %v138
    %v459 = vsub.f32 %v75, %v139
    %v460 = vsub.f32 %v76, %v140
    %v461 = vsub.f32 %v77, %v141
    %v462 = vsub.f32 %v78, %v142
    %v463 = vsub.f32 %v79, %v143
    %v464 = vsub.f32 %v80, %v144
    %v465 = vsub.f32 %v81, %v145
    %v466 = vsub.f32 %v82, %v146
    %v467 = vsub.f32 %v83, %v147
    %v468 = vsub.f32 %v84, %v148
    %v469 = vsub.f32 %v85, %v149
    %v470 = vsub.f32 %v86, %v150
    %v471 = vsub.f32 %v87, %v151
    %v472 = vsub.f32 %v88, %v152
    %v473 = vsub.f32 %v89, %v153
    %v474 = vsub.f32 %v90, %v154
    %v475 = vsub.f32 %v91, %v155
    %v476 = vsub.f32 %v92, %v156
    %v477 = vsub.f32 %v93, %v157
    %v478 = vsub.f32 %v94, %v158
    %v479 = vsub.f32 %v95, %v159
    %v480 = vsub.f32 %v96, %v160
    %v481 = vsub.f32 %v97, %v161
    %v482 = vsub.f32 %v98, %v162
    %v483 = vsub.f32 %v99, %v163
    %v484 = vsub.f32 %v100, %v164
    %v485 = vsub.f32 %v101, %v165
    %v486 = vsub.f32 %v102, %v166
    %v487 = vsub.f32 %v103, %v167
    %v488 = vsub.f32 %v104, %v168
    %v489 = vsub.f32 %v105, %v169
    %v490 = vsub.f32 %v106, %v170
    %v491 = vsub.f32 %v107, %v171
    %v492 = vsub.f32 %v108, %v172
    %v493 = vsub.f32 %v109, %v173
    %v494 = vsub.f32 %v110, %v174
    %v495 = vsub.f32 %v111, %v175
    %v496 = vsub.f32 %v112, %v176
    %497 = vst [vmem:[#allocation10] sm:$0xff] %v433
    %498 = vst [vmem:[#allocation10 + $0x8] sm:$0xff] %v434
    %499 = vst [vmem:[#allocation10 + $0x10] sm:$0xff] %v435
    %500 = vst [vmem:[#allocation10 + $0x18] sm:$0xff] %v436
    %501 = vst [vmem:[#allocation10 + $0x20] sm:$0xff] %v437
    %502 = vst [vmem:[#allocation10 + $0x28] sm:$0xff] %v438
    %503 = vst [vmem:[#allocation10 + $0x30] sm:$0xff] %v439
    %504 = vst [vmem:[#allocation10 + $0x38] sm:$0xff] %v440
    %505 = vst [vmem:[#allocation10 + $0x40] sm:$0xff] %v441
    %506 = vst [vmem:[#allocation10 + $0x48] sm:$0xff] %v442
    %507 = vst [vmem:[#allocation10 + $0x50] sm:$0xff] %v443
    %508 = vst [vmem:[#allocation10 + $0x58] sm:$0xff] %v444
    %509 = vst [vmem:[#allocation10 + $0x60] sm:$0xff] %v445
    %510 = vst [vmem:[#allocation10 + $0x68] sm:$0xff] %v446
    %511 = vst [vmem:[#allocation10 + $0x70] sm:$0xff] %v447
    %512 = vst [vmem:[#allocation10 + $0x78] sm:$0xff] %v448
    %513 = vst [vmem:[#allocation10 + $0x80] sm:$0xff] %v449
    %514 = vst [vmem:[#allocation10 + $0x88] sm:$0xff] %v450
    %515 = vst [vmem:[#allocation10 + $0x90] sm:$0xff] %v451
    %516 = vst [vmem:[#allocation10 + $0x98] sm:$0xff] %v452
    %517 = vst [vmem:[#allocation10 + $0xa0] sm:$0xff] %v453
    %518 = vst [vmem:[#allocation10 + $0xa8] sm:$0xff] %v454
    %519 = vst [vmem:[#allocation10 + $0xb0] sm:$0xff] %v455
    %520 = vst [vmem:[#allocation10 + $0xb8] sm:$0xff] %v456
    %521 = vst [vmem:[#allocation10 + $0xc0] sm:$0xff] %v457
    %522 = vst [vmem:[#allocation10 + $0xc8] sm:$0xff] %v458
    %523 = vst [vmem:[#allocation10 + $0xd0] sm:$0xff] %v459
    %524 = vst [vmem:[#allocation10 + $0xd8] sm:$0xff] %v460
    %525 = vst [vmem:[#allocation10 + $0xe0] sm:$0xff] %v461
    %526 = vst [vmem:[#allocation10 + $0xe8] sm:$0xff] %v462
    %527 = vst [vmem:[#allocation10 + $0xf0] sm:$0xff] %v463
    %528 = vst [vmem:[#allocation10 + $0xf8] sm:$0xff] %v464
    %529 = vst [vmem:[#allocation10 + $0x100] sm:$0xff] %v465
    %530 = vst [vmem:[#allocation10 + $0x108] sm:$0xff] %v466
    %531 = vst [vmem:[#allocation10 + $0x110] sm:$0xff] %v467
    %532 = vst [vmem:[#allocation10 + $0x118] sm:$0xff] %v468
    %533 = vst [vmem:[#allocation10 + $0x120] sm:$0xff] %v469
    %534 = vst [vmem:[#allocation10 + $0x128] sm:$0xff] %v470
    %535 = vst [vmem:[#allocation10 + $0x130] sm:$0xff] %v471
    %536 = vst [vmem:[#allocation10 + $0x138] sm:$0xff] %v472
    %537 = vst [vmem:[#allocation10 + $0x140] sm:$0xff] %v473
    %538 = vst [vmem:[#allocation10 + $0x148] sm:$0xff] %v474
    %539 = vst [vmem:[#allocation10 + $0x150] sm:$0xff] %v475
    %540 = vst [vmem:[#allocation10 + $0x158] sm:$0xff] %v476
    %541 = vst [vmem:[#allocation10 + $0x160] sm:$0xff] %v477
    %542 = vst [vmem:[#allocation10 + $0x168] sm:$0xff] %v478
    %543 = vst [vmem:[#allocation10 + $0x170] sm:$0xff] %v479
    %544 = vst [vmem:[#allocation10 + $0x178] sm:$0xff] %v480
    %545 = vst [vmem:[#allocation10 + $0x180] sm:$0xff] %v481
    %546 = vst [vmem:[#allocation10 + $0x188] sm:$0xff] %v482
    %547 = vst [vmem:[#allocation10 + $0x190] sm:$0xff] %v483
    %548 = vst [vmem:[#allocation10 + $0x198] sm:$0xff] %v484
    %549 = vst [vmem:[#allocation10 + $0x1a0] sm:$0xff] %v485
    %550 = vst [vmem:[#allocation10 + $0x1a8] sm:$0xff] %v486
    %551 = vst [vmem:[#allocation10 + $0x1b0] sm:$0xff] %v487
    %552 = vst [vmem:[#allocation10 + $0x1b8] sm:$0xff] %v488
    %553 = vst [vmem:[#allocation10 + $0x1c0] sm:$0xff] %v489
    %554 = vst [vmem:[#allocation10 + $0x1c8] sm:$0xff] %v490
    %555 = vst [vmem:[#allocation10 + $0x1d0] sm:$0xff] %v491
    %556 = vst [vmem:[#allocation10 + $0x1d8] sm:$0xff] %v492
    %557 = vst [vmem:[#allocation10 + $0x1e0] sm:$0xff] %v493
    %558 = vst [vmem:[#allocation10 + $0x1e8] sm:$0xff] %v494
    %559 = vst [vmem:[#allocation10 + $0x1f0] sm:$0xff] %v495
    %560 = vst [vmem:[#allocation10 + $0x1f8] sm:$0xff] %v496
    %v561 = vrcp.pop %v113
    %v562 = vmul.f32 %v49, %v561
    %v563 = vrcp.pop %v114
    %v564 = vmul.f32 %v50, %v563
    %v565 = vrcp.pop %v115
    %v566 = vmul.f32 %v51, %v565
    %v567 = vrcp.pop %v116
    %v568 = vmul.f32 %v52, %v567
    %v569 = vrcp.pop %v117
    %v570 = vmul.f32 %v53, %v569
    %v571 = vrcp.pop %v118
    %v572 = vmul.f32 %v54, %v571
    %v573 = vrcp.pop %v119
    %v574 = vmul.f32 %v55, %v573
    %v575 = vrcp.pop %v120
    %v576 = vmul.f32 %v56, %v575
    %v577 = vrcp.pop %v121
    %v578 = vmul.f32 %v57, %v577
    %v579 = vrcp.pop %v122
    %v580 = vmul.f32 %v58, %v579
    %v581 = vrcp.pop %v123
    %v582 = vmul.f32 %v59, %v581
    %v583 = vrcp.pop %v124
    %v584 = vmul.f32 %v60, %v583
    %v585 = vrcp.pop %v125
    %v586 = vmul.f32 %v61, %v585
    %v587 = vrcp.pop %v126
    %v588 = vmul.f32 %v62, %v587
    %v589 = vrcp.pop %v127
    %v590 = vmul.f32 %v63, %v589
    %v591 = vrcp.pop %v128
    %v592 = vmul.f32 %v64, %v591
    %v593 = vrcp.pop %v129
    %v594 = vmul.f32 %v65, %v593
    %v595 = vrcp.pop %v130
    %v596 = vmul.f32 %v66, %v595
    %v597 = vrcp.pop %v131
    %v598 = vmul.f32 %v67, %v597
    %v599 = vrcp.pop %v132
    %v600 = vmul.f32 %v68, %v599
    %v601 = vrcp.pop %v133
    %v602 = vmul.f32 %v69, %v601
    %v603 = vrcp.pop %v134
    %v604 = vmul.f32 %v70, %v603
    %v605 = vrcp.pop %v135
    %v606 = vmul.f32 %v71, %v605
    %v607 = vrcp.pop %v136
    %v608 = vmul.f32 %v72, %v607
    %v609 = vrcp.pop %v137
    %v610 = vmul.f32 %v73, %v609
    %v611 = vrcp.pop %v138
    %v612 = vmul.f32 %v74, %v611
    %v613 = vrcp.pop %v139
    %v614 = vmul.f32 %v75, %v613
    %v615 = vrcp.pop %v140
    %v616 = vmul.f32 %v76, %v615
    %v617 = vrcp.pop %v141
    %v618 = vmul.f32 %v77, %v617
    %v619 = vrcp.pop %v142
    %v620 = vmul.f32 %v78, %v619
    %v621 = vrcp.pop %v143
    %v622 = vmul.f32 %v79, %v621
    %v623 = vrcp.pop %v144
    %v624 = vmul.f32 %v80, %v623
    %v625 = vrcp.pop %v145
    %v626 = vmul.f32 %v81, %v625
    %v627 = vrcp.pop %v146
    %v628 = vmul.f32 %v82, %v627
    %v629 = vrcp.pop %v147
    %v630 = vmul.f32 %v83, %v629
    %v631 = vrcp.pop %v148
    %v632 = vmul.f32 %v84, %v631
    %v633 = vrcp.pop %v149
    %v634 = vmul.f32 %v85, %v633
    %v635 = vrcp.pop %v150
    %v636 = vmul.f32 %v86, %v635
    %v637 = vrcp.pop %v151
    %v638 = vmul.f32 %v87, %v637
    %v639 = vrcp.pop %v152
    %v640 = vmul.f32 %v88, %v639
    %v641 = vrcp.pop %v153
    %v642 = vmul.f32 %v89, %v641
    %v643 = vrcp.pop %v154
    %v644 = vmul.f32 %v90, %v643
    %v645 = vrcp.pop %v155
    %v646 = vmul.f32 %v91, %v645
    %v647 = vrcp.pop %v156
    %v648 = vmul.f32 %v92, %v647
    %v649 = vrcp.pop %v157
    %v650 = vmul.f32 %v93, %v649
    %v651 = vrcp.pop %v158
    %v652 = vmul.f32 %v94, %v651
    %v653 = vrcp.pop %v159
    %v654 = vmul.f32 %v95, %v653
    %v655 = vrcp.pop %v160
    %v656 = vmul.f32 %v96, %v655
    %v657 = vrcp.pop %v161
    %v658 = vmul.f32 %v97, %v657
    %v659 = vrcp.pop %v162
    %v660 = vmul.f32 %v98, %v659
    %v661 = vrcp.pop %v163
    %v662 = vmul.f32 %v99, %v661
    %v663 = vrcp.pop %v164
    %v664 = vmul.f32 %v100, %v663
    %v665 = vrcp.pop %v165
    %v666 = vmul.f32 %v101, %v665
    %v667 = vrcp.pop %v166
    %v668 = vmul.f32 %v102, %v667
    %v669 = vrcp.pop %v167
    %v670 = vmul.f32 %v103, %v669
    %v671 = vrcp.pop %v168
    %v672 = vmul.f32 %v104, %v671
    %v673 = vrcp.pop %v169
    %v674 = vmul.f32 %v105, %v673
    %v675 = vrcp.pop %v170
    %v676 = vmul.f32 %v106, %v675
    %v677 = vrcp.pop %v171
    %v678 = vmul.f32 %v107, %v677
    %v679 = vrcp.pop %v172
    %v680 = vmul.f32 %v108, %v679
    %v681 = vrcp.pop %v173
    %v682 = vmul.f32 %v109, %v681
    %v683 = vrcp.pop %v174
    %v684 = vmul.f32 %v110, %v683
    %v685 = vrcp.pop %v175
    %v686 = vmul.f32 %v111, %v685
    %v687 = vrcp.pop %v176
    %v688 = vmul.f32 %v112, %v687
    %689 = vst [vmem:[#allocation11] sm:$0xff] %v562
    %690 = vst [vmem:[#allocation11 + $0x8] sm:$0xff] %v564
    %691 = vst [vmem:[#allocation11 + $0x10] sm:$0xff] %v566
    %692 = vst [vmem:[#allocation11 + $0x18] sm:$0xff] %v568
    %693 = vst [vmem:[#allocation11 + $0x20] sm:$0xff] %v570
    %694 = vst [vmem:[#allocation11 + $0x28] sm:$0xff] %v572
    %695 = vst [vmem:[#allocation11 + $0x30] sm:$0xff] %v574
    %696 = vst [vmem:[#allocation11 + $0x38] sm:$0xff] %v576
    %697 = vst [vmem:[#allocation11 + $0x40] sm:$0xff] %v578
    %698 = vst [vmem:[#allocation11 + $0x48] sm:$0xff] %v580
    %699 = vst [vmem:[#allocation11 + $0x50] sm:$0xff] %v582
    %700 = vst [vmem:[#allocation11 + $0x58] sm:$0xff] %v584
    %701 = vst [vmem:[#allocation11 + $0x60] sm:$0xff] %v586
    %702 = vst [vmem:[#allocation11 + $0x68] sm:$0xff] %v588
    %703 = vst [vmem:[#allocation11 + $0x70] sm:$0xff] %v590
    %704 = vst [vmem:[#allocation11 + $0x78] sm:$0xff] %v592
    %705 = vst [vmem:[#allocation11 + $0x80] sm:$0xff] %v594
    %706 = vst [vmem:[#allocation11 + $0x88] sm:$0xff] %v596
    %707 = vst [vmem:[#allocation11 + $0x90] sm:$0xff] %v598
    %708 = vst [vmem:[#allocation11 + $0x98] sm:$0xff] %v600
    %709 = vst [vmem:[#allocation11 + $0xa0] sm:$0xff] %v602
    %710 = vst [vmem:[#allocation11 + $0xa8] sm:$0xff] %v604
    %711 = vst [vmem:[#allocation11 + $0xb0] sm:$0xff] %v606
    %712 = vst [vmem:[#allocation11 + $0xb8] sm:$0xff] %v608
    %713 = vst [vmem:[#allocation11 + $0xc0] sm:$0xff] %v610
    %714 = vst [vmem:[#allocation11 + $0xc8] sm:$0xff] %v612
    %715 = vst [vmem:[#allocation11 + $0xd0] sm:$0xff] %v614
    %716 = vst [vmem:[#allocation11 + $0xd8] sm:$0xff] %v616
    %717 = vst [vmem:[#allocation11 + $0xe0] sm:$0xff] %v618
    %718 = vst [vmem:[#allocation11 + $0xe8] sm:$0xff] %v620
    %719 = vst [vmem:[#allocation11 + $0xf0] sm:$0xff] %v622
    %720 = vst [vmem:[#allocation11 + $0xf8] sm:$0xff] %v624
    %721 = vst [vmem:[#allocation11 + $0x100] sm:$0xff] %v626
    %722 = vst [vmem:[#allocation11 + $0x108] sm:$0xff] %v628
    %723 = vst [vmem:[#allocation11 + $0x110] sm:$0xff] %v630
    %724 = vst [vmem:[#allocation11 + $0x118] sm:$0xff] %v632
    %725 = vst [vmem:[#allocation11 + $0x120] sm:$0xff] %v634
    %726 = vst [vmem:[#allocation11 + $0x128] sm:$0xff] %v636
    %727 = vst [vmem:[#allocation11 + $0x130] sm:$0xff] %v638
    %728 = vst [vmem:[#allocation11 + $0x138] sm:$0xff] %v640
    %729 = vst [vmem:[#allocation11 + $0x140] sm:$0xff] %v642
    %730 = vst [vmem:[#allocation11 + $0x148] sm:$0xff] %v644
    %731 = vst [vmem:[#allocation11 + $0x150] sm:$0xff] %v646
    %732 = vst [vmem:[#allocation11 + $0x158] sm:$0xff] %v648
    %733 = vst [vmem:[#allocation11 + $0x160] sm:$0xff] %v650
    %734 = vst [vmem:[#allocation11 + $0x168] sm:$0xff] %v652
    %735 = vst [vmem:[#allocation11 + $0x170] sm:$0xff] %v654
    %736 = vst [vmem:[#allocation11 + $0x178] sm:$0xff] %v656
    %737 = vst [vmem:[#allocation11 + $0x180] sm:$0xff] %v658
    %738 = vst [vmem:[#allocation11 + $0x188] sm:$0xff] %v660
    %739 = vst [vmem:[#allocation11 + $0x190] sm:$0xff] %v662
    %740 = vst [vmem:[#allocation11 + $0x198] sm:$0xff] %v664
    %741 = vst [vmem:[#allocation11 + $0x1a0] sm:$0xff] %v666
    %742 = vst [vmem:[#allocation11 + $0x1a8] sm:$0xff] %v668
    %743 = vst [vmem:[#allocation11 + $0x1b0] sm:$0xff] %v670
    %744 = vst [vmem:[#allocation11 + $0x1b8] sm:$0xff] %v672
    %745 = vst [vmem:[#allocation11 + $0x1c0] sm:$0xff] %v674
    %746 = vst [vmem:[#allocation11 + $0x1c8] sm:$0xff] %v676
    %747 = vst [vmem:[#allocation11 + $0x1d0] sm:$0xff] %v678
    %748 = vst [vmem:[#allocation11 + $0x1d8] sm:$0xff] %v680
    %749 = vst [vmem:[#allocation11 + $0x1e0] sm:$0xff] %v682
    %750 = vst [vmem:[#allocation11 + $0x1e8] sm:$0xff] %v684
    %751 = vst [vmem:[#allocation11 + $0x1f0] sm:$0xff] %v686
    %752 = vst [vmem:[#allocation11 + $0x1f8] sm:$0xff] %v688
    %v753 = vmax.f32 %v49, 0.0
    %v754 = vmax.f32 %v50, 0.0
    %v755 = vmax.f32 %v51, 0.0
    %v756 = vmax.f32 %v52, 0.0
    %v757 = vmax.f32 %v53, 0.0
    %v758 = vmax.f32 %v54, 0.0
    %v759 = vmax.f32 %v55, 0.0
    %v760 = vmax.f32 %v56, 0.0
    %v761 = vmax.f32 %v57, 0.0
    %v762 = vmax.f32 %v58, 0.0
    %v763 = vmax.f32 %v59, 0.0
    %v764 = vmax.f32 %v60, 0.0
    %v765 = vmax.f32 %v61, 0.0
    %v766 = vmax.f32 %v62, 0.0
    %v767 = vmax.f32 %v63, 0.0
    %v768 = vmax.f32 %v64, 0.0
    %v769 = vmax.f32 %v65, 0.0
    %v770 = vmax.f32 %v66, 0.0
    %v771 = vmax.f32 %v67, 0.0
    %v772 = vmax.f32 %v68, 0.0
    %v773 = vmax.f32 %v69, 0.0
    %v774 = vmax.f32 %v70, 0.0
    %v775 = vmax.f32 %v71, 0.0
    %v776 = vmax.f32 %v72, 0.0
    %v777 = vmax.f32 %v73, 0.0
    %v778 = vmax.f32 %v74, 0.0
    %v779 = vmax.f32 %v75, 0.0
    %v780 = vmax.f32 %v76, 0.0
    %v781 = vmax.f32 %v77, 0.0
    %v782 = vmax.f32 %v78, 0.0
    %v783 = vmax.f32 %v79, 0.0
    %v784 = vmax.f32 %v80, 0.0
    %v785 = vmax.f32 %v81, 0.0
    %v786 = vmax.f32 %v82, 0.0
    %v787 = vmax.f32 %v83, 0.0
    %v788 = vmax.f32 %v84, 0.0
    %v789 = vmax.f32 %v85, 0.0
    %v790 = vmax.f32 %v86, 0.0
    %v791 = vmax.f32 %v87, 0.0
    %v792 = vmax.f32 %v88, 0.0
    %v793 = vmax.f32 %v89, 0.0
    %v794 = vmax.f32 %v90, 0.0
    %v795 = vmax.f32 %v91, 0.0
    %v796 = vmax.f32 %v92, 0.0
    %v797 = vmax.f32 %v93, 0.0
    %v798 = vmax.f32 %v94, 0.0
    %v799 = vmax.f32 %v95, 0.0
    %v800 = vmax.f32 %v96, 0.0
    %v801 = vmax.f32 %v97, 0.0
    %v802 = vmax.f32 %v98, 0.0
    %v803 = vmax.f32 %v99, 0.0
    %v804 = vmax.f32 %v100, 0.0
    %v805 = vmax.f32 %v101, 0.0
    %v806 = vmax.f32 %v102, 0.0
    %v807 = vmax.f32 %v103, 0.0
    %v808 = vmax.f32 %v104, 0.0
    %v809 = vmax.f32 %v105, 0.0
    %v810 = vmax.f32 %v106, 0.0
    %v811 = vmax.f32 %v107, 0.0
    %v812 = vmax.f32 %v108, 0.0
    %v813 = vmax.f32 %v109, 0.0
    %v814 = vmax.f32 %v110, 0.0
    %v815 = vmax.f32 %v111, 0.0
    %v816 = vmax.f32 %v112, 0.0
    %817 = vst [vmem:[#allocation13] sm:$0xff] %v753
    %818 = vst [vmem:[#allocation13 + $0x8] sm:$0xff] %v754
    %819 = vst [vmem:[#allocation13 + $0x10] sm:$0xff] %v755
    %820 = vst [vmem:[#allocation13 + $0x18] sm:$0xff] %v756
    %821 = vst [vmem:[#allocation13 + $0x20] sm:$0xff] %v757
    %822 = vst [vmem:[#allocation13 + $0x28] sm:$0xff] %v758
    %823 = vst [vmem:[#allocation13 + $0x30] sm:$0xff] %v759
    %824 = vst [vmem:[#allocation13 + $0x38] sm:$0xff] %v760
    %825 = vst [vmem:[#allocation13 + $0x40] sm:$0xff] %v761
    %826 = vst [vmem:[#allocation13 + $0x48] sm:$0xff] %v762
    %827 = vst [vmem:[#allocation13 + $0x50] sm:$0xff] %v763
    %828 = vst [vmem:[#allocation13 + $0x58] sm:$0xff] %v764
    %829 = vst [vmem:[#allocation13 + $0x60] sm:$0xff] %v765
    %830 = vst [vmem:[#allocation13 + $0x68] sm:$0xff] %v766
    %831 = vst [vmem:[#allocation13 + $0x70] sm:$0xff] %v767
    %832 = vst [vmem:[#allocation13 + $0x78] sm:$0xff] %v768
    %833 = vst [vmem:[#allocation13 + $0x80] sm:$0xff] %v769
    %834 = vst [vmem:[#allocation13 + $0x88] sm:$0xff] %v770
    %835 = vst [vmem:[#allocation13 + $0x90] sm:$0xff] %v771
    %836 = vst [vmem:[#allocation13 + $0x98] sm:$0xff] %v772
    %837 = vst [vmem:[#allocation13 + $0xa0] sm:$0xff] %v773
    %838 = vst [vmem:[#allocation13 + $0xa8] sm:$0xff] %v774
    %839 = vst [vmem:[#allocation13 + $0xb0] sm:$0xff] %v775
    %840 = vst [vmem:[#allocation13 + $0xb8] sm:$0xff] %v776
    %841 = vst [vmem:[#allocation13 + $0xc0] sm:$0xff] %v777
    %842 = vst [vmem:[#allocation13 + $0xc8] sm:$0xff] %v778
    %843 = vst [vmem:[#allocation13 + $0xd0] sm:$0xff] %v779
    %844 = vst [vmem:[#allocation13 + $0xd8] sm:$0xff] %v780
    %845 = vst [vmem:[#allocation13 + $0xe0] sm:$0xff] %v781
    %846 = vst [vmem:[#allocation13 + $0xe8] sm:$0xff] %v782
    %847 = vst [vmem:[#allocation13 + $0xf0] sm:$0xff] %v783
    %848 = vst [vmem:[#allocation13 + $0xf8] sm:$0xff] %v784
    %849 = vst [vmem:[#allocation13 + $0x100] sm:$0xff] %v785
    %850 = vst [vmem:[#allocation13 + $0x108] sm:$0xff] %v786
    %851 = vst [vmem:[#allocation13 + $0x110] sm:$0xff] %v787
    %852 = vst [vmem:[#allocation13 + $0x118] sm:$0xff] %v788
    %853 = vst [vmem:[#allocation13 + $0x120] sm:$0xff] %v789
    %854 = vst [vmem:[#allocation13 + $0x128] sm:$0xff] %v790
    %855 = vst [vmem:[#allocation13 + $0x130] sm:$0xff] %v791
    %856 = vst [vmem:[#allocation13 + $0x138] sm:$0xff] %v792
    %857 = vst [vmem:[#allocation13 + $0x140] sm:$0xff] %v793
    %858 = vst [vmem:[#allocation13 + $0x148] sm:$0xff] %v794
    %859 = vst [vmem:[#allocation13 + $0x150] sm:$0xff] %v795
    %860 = vst [vmem:[#allocation13 + $0x158] sm:$0xff] %v796
    %861 = vst [vmem:[#allocation13 + $0x160] sm:$0xff] %v797
    %862 = vst [vmem:[#allocation13 + $0x168] sm:$0xff] %v798
    %863 = vst [vmem:[#allocation13 + $0x170] sm:$0xff] %v799
    %864 = vst [vmem:[#allocation13 + $0x178] sm:$0xff] %v800
    %865 = vst [vmem:[#allocation13 + $0x180] sm:$0xff] %v801
    %866 = vst [vmem:[#allocation13 + $0x188] sm:$0xff] %v802
    %867 = vst [vmem:[#allocation13 + $0x190] sm:$0xff] %v803
    %868 = vst [vmem:[#allocation13 + $0x198] sm:$0xff] %v804
    %869 = vst [vmem:[#allocation13 + $0x1a0] sm:$0xff] %v805
    %870 = vst [vmem:[#allocation13 + $0x1a8] sm:$0xff] %v806
    %871 = vst [vmem:[#allocation13 + $0x1b0] sm:$0xff] %v807
    %872 = vst [vmem:[#allocation13 + $0x1b8] sm:$0xff] %v808
    %873 = vst [vmem:[#allocation13 + $0x1c0] sm:$0xff] %v809
    %874 = vst [vmem:[#allocation13 + $0x1c8] sm:$0xff] %v810
    %875 = vst [vmem:[#allocation13 + $0x1d0] sm:$0xff] %v811
    %876 = vst [vmem:[#allocation13 + $0x1d8] sm:$0xff] %v812
    %877 = vst [vmem:[#allocation13 + $0x1e0] sm:$0xff] %v813
    %878 = vst [vmem:[#allocation13 + $0x1e8] sm:$0xff] %v814
    %879 = vst [vmem:[#allocation13 + $0x1f0] sm:$0xff] %v815
    %880 = vst [vmem:[#allocation13 + $0x1f8] sm:$0xff] %v816
    %881 = vmatprep.subr.mxu0 %v114
    %882 = vmatpush1.msra.mxu0 %v113
    %883 = vmatprep.subr.mxu0 %v116
    %884 = vmatpush1.msra.mxu0 %v115
    %885 = vmatprep.subr.mxu0 %v118
    %886 = vmatpush1.msra.mxu0 %v117
    %887 = vmatprep.subr.mxu0 %v120
    %888 = vmatpush1.msra.mxu0 %v119
    %889 = vmatprep.subr.mxu0 %v122
    %890 = vmatpush1.msra.mxu0 %v121
    %891 = vmatprep.subr.mxu0 %v124
    %892 = vmatpush1.msra.mxu0 %v123
    %893 = vmatprep.subr.mxu0 %v126
    %894 = vmatpush1.msra.mxu0 %v125
    %895 = vmatprep.subr.mxu0 %v128
    %896 = vmatpush1.msra.mxu0 %v127
    %897 = vmatprep.subr.mxu0 %v130
    %898 = vmatpush1.msra.mxu0 %v129
    %899 = vmatprep.subr.mxu0 %v132
    %900 = vmatpush1.msra.mxu0 %v131
    %901 = vmatprep.subr.mxu0 %v134
    %902 = vmatpush1.msra.mxu0 %v133
    %903 = vmatprep.subr.mxu0 %v136
    %904 = vmatpush1.msra.mxu0 %v135
    %905 = vmatprep.subr.mxu0 %v138
    %906 = vmatpush1.msra.mxu0 %v137
    %907 = vmatprep.subr.mxu0 %v140
    %908 = vmatpush1.msra.mxu0 %v139
    %909 = vmatprep.subr.mxu0 %v142
    %910 = vmatpush1.msra.mxu0 %v141
    %911 = vmatprep.subr.mxu0 %v144
    %912 = vmatpush1.msra.mxu0 %v143
    %913 = vmatprep.subr.mxu0 %v146
    %914 = vmatpush1.msra.mxu0 %v145
    %915 = vmatprep.subr.mxu0 %v148
    %916 = vmatpush1.msra.mxu0 %v147
    %917 = vmatprep.subr.mxu0 %v150
    %918 = vmatpush1.msra.mxu0 %v149
    %919 = vmatprep.subr.mxu0 %v152
    %920 = vmatpush1.msra.mxu0 %v151
    %921 = vmatprep.subr.mxu0 %v154
    %922 = vmatpush1.msra.mxu0 %v153
    %923 = vmatprep.subr.mxu0 %v156
    %924 = vmatpush1.msra.mxu0 %v155
    %925 = vmatprep.subr.mxu0 %v158
    %926 = vmatpush1.msra.mxu0 %v157
    %927 = vmatprep.subr.mxu0 %v160
    %928 = vmatpush1.msra.mxu0 %v159
    %929 = vmatprep.subr.mxu0 %v162
    %930 = vmatpush1.msra.mxu0 %v161
    %931 = vmatprep.subr.mxu0 %v164
    %932 = vmatpush1.msra.mxu0 %v163
    %933 = vmatprep.subr.mxu0 %v166
    %934 = vmatpush1.msra.mxu0 %v165
    %935 = vmatprep.subr.mxu0 %v168
    %936 = vmatpush1.msra.mxu0 %v167
    %937 = vmatprep.subr.mxu0 %v170
    %938 = vmatpush1.msra.mxu0 %v169
    %939 = vmatprep.subr.mxu0 %v172
    %940 = vmatpush1.msra.mxu0 %v171
    %941 = vmatprep.subr.mxu0 %v174
    %942 = vmatpush1.msra.mxu0 %v173
    %943 = vmatprep.subr.mxu0 %v176
    %944 = vmatpush1.msra.mxu0 %v175
    %945 = vmatprep.mubr.f32.mxu0 %v50
    %946 = vmatmul.mubr.f32.gmra.mrb[0].mxu0 %v49
    %v947 = vpop.f32.mrb[0].mxu0
    %v948 = vadd.f32 0.0, %v947
    %v949 = vpop.f32.mrb[0].mxu0
    %v950 = vadd.f32 0.0, %v949
    %951 = vmatprep.mubr.f32.mxu0 %v52
    %952 = vmatmul.mubr.f32.gmra.mrb[0].mxu0 %v51
    %v953 = vpop.f32.mrb[0].mxu0
    %v954 = vadd.f32 0.0, %v953
    %v955 = vpop.f32.mrb[0].mxu0
    %v956 = vadd.f32 0.0, %v955
    %957 = vmatprep.mubr.f32.mxu0 %v54
    %958 = vmatmul.mubr.f32.gmra.mrb[0].mxu0 %v53
    %v959 = vpop.f32.mrb[0].mxu0
    %v960 = vadd.f32 0.0, %v959
    %v961 = vpop.f32.mrb[0].mxu0
    %v962 = vadd.f32 0.0, %v961
    %963 = vmatprep.mubr.f32.mxu0 %v56
    %964 = vmatmul.mubr.f32.gmra.mrb[0].mxu0 %v55
    %v965 = vpop.f32.mrb[0].mxu0
    %v966 = vadd.f32 0.0, %v965
    %v967 = vpop.f32.mrb[0].mxu0
    %v968 = vadd.f32 0.0, %v967
    %969 = vmatprep.mubr.f32.mxu0 %v58
    %970 = vmatmul.mubr.f32.gmra.mrb[0].mxu0 %v57
    %v971 = vpop.f32.mrb[0].mxu0
    %v972 = vadd.f32 0.0, %v971
    %v973 = vpop.f32.mrb[0].mxu0
    %v974 = vadd.f32 0.0, %v973
    %975 = vmatprep.mubr.f32.mxu0 %v60
    %976 = vmatmul.mubr.f32.gmra.mrb[0].mxu0 %v59
    %v977 = vpop.f32.mrb[0].mxu0
    %v978 = vadd.f32 0.0, %v977
    %v979 = vpop.f32.mrb[0].mxu0
    %v980 = vadd.f32 0.0, %v979
    %981 = vmatprep.mubr.f32.mxu0 %v62
    %982 = vmatmul.mubr.f32.gmra.mrb[0].mxu0 %v61
    %v983 = vpop.f32.mrb[0].mxu0
    %v984 = vadd.f32 0.0, %v983
    %v985 = vpop.f32.mrb[0].mxu0
    %v986 = vadd.f32 0.0, %v985
    %987 = vmatprep.mubr.f32.mxu0 %v64
    %988 = vmatmul.mubr.f32.gmra.mrb[0].mxu0 %v63
    %v989 = vpop.f32.mrb[0].mxu0
    %v990 = vadd.f32 0.0, %v989
    %v991 = vpop.f32.mrb[0].mxu0
    %v992 = vadd.f32 0.0, %v991
    %993 = vmatprep.mubr.f32.mxu0 %v66
    %994 = vmatmul.mubr.f32.gmra.mrb[0].mxu0 %v65
    %v995 = vpop.f32.mrb[0].mxu0
    %v996 = vadd.f32 0.0, %v995
    %v997 = vpop.f32.mrb[0].mxu0
    %v998 = vadd.f32 0.0, %v997
    %999 = vmatprep.mubr.f32.mxu0 %v68
    %1000 = vmatmul.mubr.f32.gmra.mrb[0].mxu0 %v67
    %v1001 = vpop.f32.mrb[0].mxu0
    %v1002 = vadd.f32 0.0, %v1001
    %v1003 = vpop.f32.mrb[0].mxu0
    %v1004 = vadd.f32 0.0, %v1003
    %1005 = vmatprep.mubr.f32.mxu0 %v70
    %1006 = vmatmul.mubr.f32.gmra.mrb[0].mxu0 %v69
    %v1007 = vpop.f32.mrb[0].mxu0
    %v1008 = vadd.f32 0.0, %v1007
    %v1009 = vpop.f32.mrb[0].mxu0
    %v1010 = vadd.f32 0.0, %v1009
    %1011 = vmatprep.mubr.f32.mxu0 %v72
    %1012 = vmatmul.mubr.f32.gmra.mrb[0].mxu0 %v71
    %v1013 = vpop.f32.mrb[0].mxu0
    %v1014 = vadd.f32 0.0, %v1013
    %v1015 = vpop.f32.mrb[0].mxu0
    %v1016 = vadd.f32 0.0, %v1015
    %1017 = vmatprep.mubr.f32.mxu0 %v74
    %1018 = vmatmul.mubr.f32.gmra.mrb[0].mxu0 %v73
    %v1019 = vpop.f32.mrb[0].mxu0
    %v1020 = vadd.f32 0.0, %v1019
    %v1021 = vpop.f32.mrb[0].mxu0
    %v1022 = vadd.f32 0.0, %v1021
    %1023 = vmatprep.mubr.f32.mxu0 %v76
    %1024 = vmatmul.mubr.f32.gmra.mrb[0].mxu0 %v75
    %v1025 = vpop.f32.mrb[0].mxu0
    %v1026 = vadd.f32 0.0, %v1025
    %v1027 = vpop.f32.mrb[0].mxu0
    %v1028 = vadd.f32 0.0, %v1027
    %1029 = vmatprep.mubr.f32.mxu0 %v78
    %1030 = vmatmul.mubr.f32.gmra.mrb[0].mxu0 %v77
    %v1031 = vpop.f32.mrb[0].mxu0
    %v1032 = vadd.f32 0.0, %v1031
    %v1033 = vpop.f32.mrb[0].mxu0
    %v1034 = vadd.f32 0.0, %v1033
    %1035 = vmatprep.mubr.f32.mxu0 %v80
    %1036 = vmatmul.mubr.f32.gmra.mrb[0].mxu0 %v79
    %v1037 = vpop.f32.mrb[0].mxu0
    %v1038 = vadd.f32 0.0, %v1037
    %v1039 = vpop.f32.mrb[0].mxu0
    %v1040 = vadd.f32 0.0, %v1039
    %1041 = vmatprep.mubr.f32.mxu0 %v82
    %1042 = vmatmul.mubr.f32.gmra.mrb[0].mxu0 %v81
    %v1043 = vpop.f32.mrb[0].mxu0
    %v1044 = vadd.f32 0.0, %v1043
    %v1045 = vpop.f32.mrb[0].mxu0
    %v1046 = vadd.f32 0.0, %v1045
    %1047 = vmatprep.mubr.f32.mxu0 %v84
    %1048 = vmatmul.mubr.f32.gmra.mrb[0].mxu0 %v83
    %v1049 = vpop.f32.mrb[0].mxu0
    %v1050 = vadd.f32 0.0, %v1049
    %v1051 = vpop.f32.mrb[0].mxu0
    %v1052 = vadd.f32 0.0, %v1051
    %1053 = vmatprep.mubr.f32.mxu0 %v86
    %1054 = vmatmul.mubr.f32.gmra.mrb[0].mxu0 %v85
    %v1055 = vpop.f32.mrb[0].mxu0
    %v1056 = vadd.f32 0.0, %v1055
    %v1057 = vpop.f32.mrb[0].mxu0
    %v1058 = vadd.f32 0.0, %v1057
    %1059 = vmatprep.mubr.f32.mxu0 %v88
    %1060 = vmatmul.mubr.f32.gmra.mrb[0].mxu0 %v87
    %v1061 = vpop.f32.mrb[0].mxu0
    %v1062 = vadd.f32 0.0, %v1061
    %v1063 = vpop.f32.mrb[0].mxu0
    %v1064 = vadd.f32 0.0, %v1063
    %1065 = vmatprep.mubr.f32.mxu0 %v90
    %1066 = vmatmul.mubr.f32.gmra.mrb[0].mxu0 %v89
    %v1067 = vpop.f32.mrb[0].mxu0
    %v1068 = vadd.f32 0.0, %v1067
    %v1069 = vpop.f32.mrb[0].mxu0
    %v1070 = vadd.f32 0.0, %v1069
    %1071 = vmatprep.mubr.f32.mxu0 %v92
    %1072 = vmatmul.mubr.f32.gmra.mrb[0].mxu0 %v91
    %v1073 = vpop.f32.mrb[0].mxu0
    %v1074 = vadd.f32 0.0, %v1073
    %v1075 = vpop.f32.mrb[0].mxu0
    %v1076 = vadd.f32 0.0, %v1075
    %1077 = vmatprep.mubr.f32.mxu0 %v94
    %1078 = vmatmul.mubr.f32.gmra.mrb[0].mxu0 %v93
    %v1079 = vpop.f32.mrb[0].mxu0
    %v1080 = vadd.f32 0.0, %v1079
    %v1081 = vpop.f32.mrb[0].mxu0
    %v1082 = vadd.f32 0.0, %v1081
    %1083 = vmatprep.mubr.f32.mxu0 %v96
    %1084 = vmatmul.mubr.f32.gmra.mrb[0].mxu0 %v95
    %v1085 = vpop.f32.mrb[0].mxu0
    %v1086 = vadd.f32 0.0, %v1085
    %v1087 = vpop.f32.mrb[0].mxu0
    %v1088 = vadd.f32 0.0, %v1087
    %1089 = vmatprep.mubr.f32.mxu0 %v98
    %1090 = vmatmul.mubr.f32.gmra.mrb[0].mxu0 %v97
    %v1091 = vpop.f32.mrb[0].mxu0
    %v1092 = vadd.f32 0.0, %v1091
    %v1093 = vpop.f32.mrb[0].mxu0
    %v1094 = vadd.f32 0.0, %v1093
    %1095 = vmatprep.mubr.f32.mxu0 %v100
    %1096 = vmatmul.mubr.f32.gmra.mrb[0].mxu0 %v99
    %v1097 = vpop.f32.mrb[0].mxu0
    %v1098 = vadd.f32 0.0, %v1097
    %v1099 = vpop.f32.mrb[0].mxu0
    %v1100 = vadd.f32 0.0, %v1099
    %1101 = vmatprep.mubr.f32.mxu0 %v102
    %1102 = vmatmul.mubr.f32.gmra.mrb[0].mxu0 %v101
    %v1103 = vpop.f32.mrb[0].mxu0
    %v1104 = vadd.f32 0.0, %v1103
    %v1105 = vpop.f32.mrb[0].mxu0
    %v1106 = vadd.f32 0.0, %v1105
    %1107 = vmatprep.mubr.f32.mxu0 %v104
    %1108 = vmatmul.mubr.f32.gmra.mrb[0].mxu0 %v103
    %v1109 = vpop.f32.mrb[0].mxu0
    %v1110 = vadd.f32 0.0, %v1109
    %v1111 = vpop.f32.mrb[0].mxu0
    %v1112 = vadd.f32 0.0, %v1111
    %1113 = vmatprep.mubr.f32.mxu0 %v106
    %1114 = vmatmul.mubr.f32.gmra.mrb[0].mxu0 %v105
    %v1115 = vpop.f32.mrb[0].mxu0
    %v1116 = vadd.f32 0.0, %v1115
    %v1117 = vpop.f32.mrb[0].mxu0
    %v1118 = vadd.f32 0.0, %v1117
    %1119 = vmatprep.mubr.f32.mxu0 %v108
    %1120 = vmatmul.mubr.f32.gmra.mrb[0].mxu0 %v107
    %v1121 = vpop.f32.mrb[0].mxu0
    %v1122 = vadd.f32 0.0, %v1121
    %v1123 = vpop.f32.mrb[0].mxu0
    %v1124 = vadd.f32 0.0, %v1123
    %1125 = vmatprep.mubr.f32.mxu0 %v110
    %1126 = vmatmul.mubr.f32.gmra.mrb[0].mxu0 %v109
    %v1127 = vpop.f32.mrb[0].mxu0
    %v1128 = vadd.f32 0.0, %v1127
    %v1129 = vpop.f32.mrb[0].mxu0
    %v1130 = vadd.f32 0.0, %v1129
    %1131 = vmatprep.mubr.f32.mxu0 %v112
    %1132 = vmatmul.mubr.f32.gmra.mrb[0].mxu0 %v111
    %v1133 = vpop.f32.mrb[0].mxu0
    %v1134 = vadd.f32 0.0, %v1133
    %v1135 = vpop.f32.mrb[0].mxu0
    %v1136 = vadd.f32 0.0, %v1135
    %1137 = vdwg.mxu0
    %1138 = vst [vmem:[#allocation14] sm:$0xff] %v948
    %1139 = vst [vmem:[#allocation14 + $0x8] sm:$0xff] %v950
    %1140 = vst [vmem:[#allocation14 + $0x10] sm:$0xff] %v954
    %1141 = vst [vmem:[#allocation14 + $0x18] sm:$0xff] %v956
    %1142 = vst [vmem:[#allocation14 + $0x20] sm:$0xff] %v960
    %1143 = vst [vmem:[#allocation14 + $0x28] sm:$0xff] %v962
    %1144 = vst [vmem:[#allocation14 + $0x30] sm:$0xff] %v966
    %1145 = vst [vmem:[#allocation14 + $0x38] sm:$0xff] %v968
    %1146 = vst [vmem:[#allocation14 + $0x40] sm:$0xff] %v972
    %1147 = vst [vmem:[#allocation14 + $0x48] sm:$0xff] %v974
    %1148 = vst [vmem:[#allocation14 + $0x50] sm:$0xff] %v978
    %1149 = vst [vmem:[#allocation14 + $0x58] sm:$0xff] %v980
    %1150 = vst [vmem:[#allocation14 + $0x60] sm:$0xff] %v984
    %1151 = vst [vmem:[#allocation14 + $0x68] sm:$0xff] %v986
    %1152 = vst [vmem:[#allocation14 + $0x70] sm:$0xff] %v990
    %1153 = vst [vmem:[#allocation14 + $0x78] sm:$0xff] %v992
    %1154 = vst [vmem:[#allocation14 + $0x80] sm:$0xff] %v996
    %1155 = vst [vmem:[#allocation14 + $0x88] sm:$0xff] %v998
    %1156 = vst [vmem:[#allocation14 + $0x90] sm:$0xff] %v1002
    %1157 = vst [vmem:[#allocation14 + $0x98] sm:$0xff] %v1004
    %1158 = vst [vmem:[#allocation14 + $0xa0] sm:$0xff] %v1008
    %1159 = vst [vmem:[#allocation14 + $0xa8] sm:$0xff] %v1010
    %1160 = vst [vmem:[#allocation14 + $0xb0] sm:$0xff] %v1014
    %1161 = vst [vmem:[#allocation14 + $0xb8] sm:$0xff] %v1016
    %1162 = vst [vmem:[#allocation14 + $0xc0] sm:$0xff] %v1020
    %1163 = vst [vmem:[#allocation14 + $0xc8] sm:$0xff] %v1022
    %1164 = vst [vmem:[#allocation14 + $0xd0] sm:$0xff] %v1026
    %1165 = vst [vmem:[#allocation14 + $0xd8] sm:$0xff] %v1028
    %1166 = vst [vmem:[#allocation14 + $0xe0] sm:$0xff] %v1032
    %1167 = vst [vmem:[#allocation14 + $0xe8] sm:$0xff] %v1034
    %1168 = vst [vmem:[#allocation14 + $0xf0] sm:$0xff] %v1038
    %1169 = vst [vmem:[#allocation14 + $0xf8] sm:$0xff] %v1040
    %1170 = vst [vmem:[#allocation14 + $0x100] sm:$0xff] %v1044
    %1171 = vst [vmem:[#allocation14 + $0x108] sm:$0xff] %v1046
    %1172 = vst [vmem:[#allocation14 + $0x110] sm:$0xff] %v1050
    %1173 = vst [vmem:[#allocation14 + $0x118] sm:$0xff] %v1052
    %1174 = vst [vmem:[#allocation14 + $0x120] sm:$0xff] %v1056
    %1175 = vst [vmem:[#allocation14 + $0x128] sm:$0xff] %v1058
    %1176 = vst [vmem:[#allocation14 + $0x130] sm:$0xff] %v1062
    %1177 = vst [vmem:[#allocation14 + $0x138] sm:$0xff] %v1064
    %1178 = vst [vmem:[#allocation14 + $0x140] sm:$0xff] %v1068
    %1179 = vst [vmem:[#allocation14 + $0x148] sm:$0xff] %v1070
    %1180 = vst [vmem:[#allocation14 + $0x150] sm:$0xff] %v1074
    %1181 = vst [vmem:[#allocation14 + $0x158] sm:$0xff] %v1076
    %1182 = vst [vmem:[#allocation14 + $0x160] sm:$0xff] %v1080
    %1183 = vst [vmem:[#allocation14 + $0x168] sm:$0xff] %v1082
    %1184 = vst [vmem:[#allocation14 + $0x170] sm:$0xff] %v1086
    %1185 = vst [vmem:[#allocation14 + $0x178] sm:$0xff] %v1088
    %1186 = vst [vmem:[#allocation14 + $0x180] sm:$0xff] %v1092
    %1187 = vst [vmem:[#allocation14 + $0x188] sm:$0xff] %v1094
    %1188 = vst [vmem:[#allocation14 + $0x190] sm:$0xff] %v1098
    %1189 = vst [vmem:[#allocation14 + $0x198] sm:$0xff] %v1100
    %1190 = vst [vmem:[#allocation14 + $0x1a0] sm:$0xff] %v1104
    %1191 = vst [vmem:[#allocation14 + $0x1a8] sm:$0xff] %v1106
    %1192 = vst [vmem:[#allocation14 + $0x1b0] sm:$0xff] %v1110
    %1193 = vst [vmem:[#allocation14 + $0x1b8] sm:$0xff] %v1112
    %1194 = vst [vmem:[#allocation14 + $0x1c0] sm:$0xff] %v1116
    %1195 = vst [vmem:[#allocation14 + $0x1c8] sm:$0xff] %v1118
    %1196 = vst [vmem:[#allocation14 + $0x1d0] sm:$0xff] %v1122
    %1197 = vst [vmem:[#allocation14 + $0x1d8] sm:$0xff] %v1124
    %1198 = vst [vmem:[#allocation14 + $0x1e0] sm:$0xff] %v1128
    %1199 = vst [vmem:[#allocation14 + $0x1e8] sm:$0xff] %v1130
    %1200 = vst [vmem:[#allocation14 + $0x1f0] sm:$0xff] %v1134
    %1201 = vst [vmem:[#allocation14 + $0x1f8] sm:$0xff] %v1136
    // Predicated region
    $region18: #{tpu_custom_call.1} parent=1 // pred_check
      _
    $region19: #{tpu_custom_call.1} parent=1 // pred_check_branch
      %1203 = sbr.rel (0) target = $region21
    $region20: #{tpu_custom_call.1} parent=1 // pred_region
      %s1205 = ssub.s32 8192, 8192
      %1206 = vsyncadd [#allocation4], %s1205
      %s1207 = sshll.u32 [#allocation7], 4
      %s1208 = int_to_ptr.vmem [resolvable:$true] %s1207
      %1213 = dma.vmem_to_hbm [thread:$0]  %s1208, 8192, %s2, [#allocation4], 256, 256, 16
    $region21: #{tpu_custom_call.1} parent=1 // pred_fallthru
      _
    // Predicated region
    $region22: #{tpu_custom_call.1} parent=1 // pred_check
      _
    $region23: #{tpu_custom_call.1} parent=1 // pred_check_branch
      %1215 = sbr.rel (0) target = $region25
    $region24: #{tpu_custom_call.1} parent=1 // pred_region
      %s1217 = ssub.s32 8192, 8192
      %1218 = vsyncadd [#allocation9], %s1217
      %s1219 = sshll.u32 [#allocation8], 4
      %s1220 = int_to_ptr.vmem [resolvable:$true] %s1219
      %1225 = dma.vmem_to_hbm [thread:$0]  %s1220, 8192, %s3, [#allocation9], 256, 256, 16
    $region25: #{tpu_custom_call.1} parent=1 // pred_fallthru
      _
    // Predicated region
    $region26: #{tpu_custom_call.1} parent=1 // pred_check
      _
    $region27: #{tpu_custom_call.1} parent=1 // pred_check_branch
      %1227 = sbr.rel (0) target = $region29
    $region28: #{tpu_custom_call.1} parent=1 // pred_region
      %s1229 = ssub.s32 8192, 8192
      %1230 = vsyncadd [#allocation9], %s1229
      %s1231 = sshll.u32 [#allocation10], 4
      %s1232 = int_to_ptr.vmem [resolvable:$true] %s1231
      %1237 = dma.vmem_to_hbm [thread:$0]  %s1232, 8192, %s4, [#allocation9], 256, 256, 16
    $region29: #{tpu_custom_call.1} parent=1 // pred_fallthru
      _
    // Predicated region
    $region30: #{tpu_custom_call.1} parent=1 // pred_check
      _
    $region31: #{tpu_custom_call.1} parent=1 // pred_check_branch
      %1239 = sbr.rel (0) target = $region33
    $region32: #{tpu_custom_call.1} parent=1 // pred_region
      %s1241 = ssub.s32 8192, 8192
      %1242 = vsyncadd [#allocation12], %s1241
      %s1243 = sshll.u32 [#allocation11], 4
      %s1244 = int_to_ptr.vmem [resolvable:$true] %s1243
      %1249 = dma.vmem_to_hbm [thread:$0]  %s1244, 8192, %s5, [#allocation12], 256, 256, 16
    $region33: #{tpu_custom_call.1} parent=1 // pred_fallthru
      _
    // Predicated region
    $region34: #{tpu_custom_call.1} parent=1 // pred_check
      _
    $region35: #{tpu_custom_call.1} parent=1 // pred_check_branch
      %1251 = sbr.rel (0) target = $region37
    $region36: #{tpu_custom_call.1} parent=1 // pred_region
      %s1253 = ssub.s32 8192, 8192
      %1254 = vsyncadd [#allocation12], %s1253
      %s1255 = sshll.u32 [#allocation13], 4
      %s1256 = int_to_ptr.vmem [resolvable:$true] %s1255
      %1261 = dma.vmem_to_hbm [thread:$0]  %s1256, 8192, %s6, [#allocation12], 256, 256, 16
    $region37: #{tpu_custom_call.1} parent=1 // pred_fallthru
      _
    // Predicated region
    $region38: #{tpu_custom_call.1} parent=1 // pred_check
      _
    $region39: #{tpu_custom_call.1} parent=1 // pred_check_branch
      %1263 = sbr.rel (0) target = $region41
    $region40: #{tpu_custom_call.1} parent=1 // pred_region
      %s1265 = ssub.s32 8192, 8192
      %1266 = vsyncadd [#allocation15], %s1265
      %s1267 = sshll.u32 [#allocation14], 4
      %s1268 = int_to_ptr.vmem [resolvable:$true] %s1267
      %1273 = dma.vmem_to_hbm [thread:$0]  %s1268, 8192, %s7, [#allocation15], 256, 256, 16
    $region41: #{tpu_custom_call.1} parent=1 // pred_fallthru
      _
    // Predicated region
    $region42: #{tpu_custom_call.1} parent=1 // pred_check
      _
    $region43: #{tpu_custom_call.1} parent=1 // pred_check_branch
      %1275 = sbr.rel (0) target = $region45
    $region44: #{tpu_custom_call.1} parent=1 // pred_region
      %1276 = dma.done [#allocation4], 8192
    $region45: #{tpu_custom_call.1} parent=1 // pred_fallthru
      _
    // Predicated region
    $region46: #{tpu_custom_call.1} parent=1 // pred_check
      _
    $region47: #{tpu_custom_call.1} parent=1 // pred_check_branch
      %1278 = sbr.rel (0) target = $region49
    $region48: #{tpu_custom_call.1} parent=1 // pred_region
      %1279 = dma.done [#allocation9], 8192
    $region49: #{tpu_custom_call.1} parent=1 // pred_fallthru
      _
    // Predicated region
    $region50: #{tpu_custom_call.1} parent=1 // pred_check
      _
    $region51: #{tpu_custom_call.1} parent=1 // pred_check_branch
      %1281 = sbr.rel (0) target = $region53
    $region52: #{tpu_custom_call.1} parent=1 // pred_region
      %1282 = dma.done [#allocation9], 8192
    $region53: #{tpu_custom_call.1} parent=1 // pred_fallthru
      _
    // Predicated region
    $region54: #{tpu_custom_call.1} parent=1 // pred_check
      _
    $region55: #{tpu_custom_call.1} parent=1 // pred_check_branch
      %1284 = sbr.rel (0) target = $region57
    $region56: #{tpu_custom_call.1} parent=1 // pred_region
      %1285 = dma.done [#allocation12], 8192
    $region57: #{tpu_custom_call.1} parent=1 // pred_fallthru
      _
    // Predicated region
    $region58: #{tpu_custom_call.1} parent=1 // pred_check
      _
    $region59: #{tpu_custom_call.1} parent=1 // pred_check_branch
      %1287 = sbr.rel (0) target = $region61
    $region60: #{tpu_custom_call.1} parent=1 // pred_region
      %1288 = dma.done [#allocation12], 8192
    $region61: #{tpu_custom_call.1} parent=1 // pred_fallthru
      _
    // Predicated region
    $region62: #{tpu_custom_call.1} parent=1 // pred_check
      _
    $region63: #{tpu_custom_call.1} parent=1 // pred_check_branch
      %1290 = sbr.rel (0) target = $region65
    $region64: #{tpu_custom_call.1} parent=1 // pred_region
      %1291 = dma.done [#allocation15], 8192
    $region65: #{tpu_custom_call.1} parent=1 // pred_fallthru
      _
    %1292 = vsyncpa [#allocation3], 1
    %1293 = vsyncpa [#allocation6], 1
    %1294 = vsyncpa [#allocation4], 1
    %1295 = vsyncpa [#allocation9], 1
    %1296 = vsyncpa [#allocation12], 1
    %1297 = vsyncpa [#allocation15], 1

</llo_original>
